<compile_context>
chip_gen: v5e
topology: v5e:2x2
jax: 0.10.0
libtpu: 0.0.40
codegen_flags: <defaults>
</compile_context>

<pallas_src>
import functools

import numpy as np
import jax
import jax.numpy as jnp
from jax.experimental import pallas as pl
from jax.experimental.pallas import tpu as pltpu


# ----------------------------------------------------------------------------
# Pallas kernel
# ----------------------------------------------------------------------------
def _resblock_kernel(x_ref, wpw_ref, wdw_ref, bnb_ref, o_ref, *, W, P, compute_dtype):
    """x_ref/o_ref: (bb, C, Pp) with Pp = padded H*W (lane axis).  P = real H*W."""
    x = x_ref[...]                                   # (bb, C, Pp), input dtype
    bb, C, Pp = x.shape
    cdt = compute_dtype

    # Reflection-padding boundary masks on the flattened (row-major) pixel axis.
    # Built once from a (1, 1, Pp) iota so they broadcast over batch & channels
    # with negligible vreg footprint.
    pos = jax.lax.broadcasted_iota(jnp.int32, (1, 1, Pp), 2)
    col = pos % W
    is_l = col == 0                                  # x == 0
    is_r = col == W - 1                              # x == W-1
    is_t = pos < W                                   # y == 0
    is_b = (pos >= P - W) & (pos < P)                # y == H-1 (real pixels only)

    def dw3x3_reflect(t, w9):
        """Depthwise 3x3, stride 1, reflection pad 1, no bias (BN scale pre-folded).
        t: (bb, C, Pp) pixels row-major; w9: (C, 9) taps, index 3*ky + kx.
        Shifts are XLU lane rotations over the whole block; reflection uses the
        opposite rotation at image boundaries (reflect(-1)=+1, reflect(n)=n-2).
        Padded lanes (>= P) are never selected for real pixels."""
        r_up = pltpu.roll(t, shift=Pp - W, axis=2)   # value at flat index p + W
        r_dn = pltpu.roll(t, shift=W, axis=2)        # value at flat index p - W
        rows = (
            jnp.where(is_t, r_up, r_dn),             # y - 1  (reflected at top)
            t,                                       # y
            jnp.where(is_b, r_dn, r_up),             # y + 1  (reflected at bottom)
        )
        acc = None
        for ky, rt in enumerate(rows):
            r_rt = pltpu.roll(rt, shift=Pp - 1, axis=2)   # value at flat index p + 1
            r_lt = pltpu.roll(rt, shift=1, axis=2)        # value at flat index p - 1
            cols = (
                jnp.where(is_l, r_rt, r_lt),         # x - 1  (reflected at left)
                rt,                                  # x
                jnp.where(is_r, r_lt, r_rt),         # x + 1  (reflected at right)
            )
            for kx, ct in enumerate(cols):
                tap = w9[:, 3 * ky + kx][None, :, None]   # (1, C, 1) tap broadcast
                term = ct * tap
                acc = term if acc is None else acc + term
        return acc

    x_c = x.astype(cdt)
    wpw = wpw_ref[...].astype(cdt)                   # (2, C, C) pointwise weights
    wdw = wdw_ref[...].astype(cdt)                   # (2, C, 9) taps (BN scale folded)
    bnb = bnb_ref[...].astype(cdt)                   # (C, 2)    BN biases

    # --- ReflectionPad2d(1) + BSConvU #1 (pw 1x1 no-bias, then dw 3x3 no-bias) ---
    # The pointwise conv commutes with reflection padding, so the pad is fused into
    # the depthwise stage as reflect-shifts.  Pointwise = batched MXU matmul.
    w1 = jnp.broadcast_to(wpw[0], (bb, C, C))
    t = jnp.einsum("boc,bcp->bop", w1, x_c,
                   preferred_element_type=jnp.float32).astype(cdt)
    t = dw3x3_reflect(t, wdw[0])
    # BatchNorm #1 (scale already folded into taps) + ReLU
    t = jnp.maximum(t + bnb[:, 0][None, :, None], 0)

    # --- ReflectionPad2d(1) + BSConvU #2 ---
    w2 = jnp.broadcast_to(wpw[1], (bb, C, C))
    t = jnp.einsum("boc,bcp->bop", w2, t,
                   preferred_element_type=jnp.float32).astype(cdt)
    t = dw3x3_reflect(t, wdw[1])
    # BatchNorm #2 bias (scale folded into taps)
    t = t + bnb[:, 1][None, :, None]

    # residual skip (kept in f32)
    o_ref[...] = (x.astype(jnp.float32) + t.astype(jnp.float32)).astype(o_ref.dtype)


# ----------------------------------------------------------------------------
# Wrapper
# ----------------------------------------------------------------------------
def resblock_forward(x_nchw, params, *, compute_dtype=jnp.float32,
                     target_block_bytes=2 << 20):
    """ResBlock forward.  x_nchw: (B, C, H, W) float32 (PyTorch layout).
    compute_dtype=jnp.bfloat16 is the v6e/v7x lever (keep f32 on v5e)."""
    B, C, H, W = x_nchw.shape
    P = H * W

    # Lane-dense layout: channels on sublanes, flattened pixels on lanes (free reshape).
    x = x_nchw.reshape(B, C, P)
    # Pad pixel axis to a multiple of 128 -> unmasked full-width vector stores.
    Pp = ((P + 127) // 128) * 128
    if Pp != P:
        x = jnp.pad(x, ((0, 0), (0, 0), (0, Pp - P)))

    itemsize = jnp.dtype(x_nchw.dtype).itemsize
    per_img = C * Pp * itemsize
    # Images per grid step: target ~target_block_bytes per block to amortize the
    # ~0.35us per-grid-step overhead, but keep >= 2 parallel steps when B >= 2 so
    # both v7x TensorCores get work.
    bb = max(1, min(B, target_block_bytes // per_img))
    if B >= 2:
        bb = min(bb, max(1, B // 2))
    while B % bb:                       # largest divisor of B not exceeding bb
        bb -= 1
    grid = (B // bb,)

    # Explicit VMEM budget: double-buffered in+out blocks, ~6 live f32 full-block
    # temps in the body, small parameter arrays, plus headroom.  Clamped for v7x.
    blk = bb * C * Pp
    vmem_need = (2 * 2 * blk * itemsize + 6 * blk * 4 +
                 2 * (2 * C * C + 2 * C * 9 + 2 * C) * 4)
    vmem_limit = int(min(max(vmem_need + (4 << 20), 16 << 20), 48 << 20))

    kernel = functools.partial(_resblock_kernel, W=W, P=P, compute_dtype=compute_dtype)
    y = pl.pallas_call(
        kernel,
        out_shape=jax.ShapeDtypeStruct((B, C, Pp), x_nchw.dtype),
        grid=grid,
        in_specs=[
            pl.BlockSpec((bb, C, Pp), lambda b: (b, 0, 0)),   # activations, lane-dense
            pl.BlockSpec((2, C, C), lambda b: (0, 0, 0)),     # pointwise weights
            pl.BlockSpec((2, C, 9), lambda b: (0, 0, 0)),     # depthwise taps (BN-scaled)
            pl.BlockSpec((C, 2), lambda b: (0, 0)),           # folded BN biases
        ],
        out_specs=pl.BlockSpec((bb, C, Pp), lambda b: (b, 0, 0)),
        compiler_params=pltpu.CompilerParams(
            dimension_semantics=("parallel",),
            vmem_limit_bytes=vmem_limit),
    )(x, params["wpw"], params["wdw"], params["bnb"])

    if Pp != P:
        y = y[:, :, :P]
    return y.reshape(B, C, H, W)


# ----------------------------------------------------------------------------
# Deterministic parameter construction + build-time BN fold
# ----------------------------------------------------------------------------
def make_resblock_params(key, dim):
    """Raw PyTorch-style parameters (inference-mode BN statistics)."""
    ks = jax.random.split(key, 6)

    def u(k, shape, scale):
        return jax.random.uniform(k, shape, jnp.float32, -scale, scale)

    return {
        "wpw": u(ks[0], (2, dim, dim), 0.3),   # two pointwise 1x1 weights (out, in)
        "wdw": u(ks[1], (2, dim, 9), 0.3),     # two depthwise 3x3 tap sets
        "gamma": 1.0 + u(ks[2], (2, dim), 0.1),
        "beta": u(ks[3], (2, dim), 0.1),
        "mean": u(ks[4], (2, dim), 0.2),
        "var": 1.0 + u(ks[5], (2, dim), 0.1),
        "eps": 1e-5,
    }


def fold_resblock_params(p):
    """Fold inference-mode BN: scale into the depthwise taps, keep only the biases."""
    s = p["gamma"] * jax.lax.rsqrt(p["var"] + p["eps"])   # (2, dim)
    b = p["beta"] - p["mean"] * s                          # (2, dim)
    wdw_folded = p["wdw"] * s[:, :, None]                  # BN scale folded into taps
    bnb = jnp.stack([b[0], b[1]], axis=1)                  # (dim, 2) remaining biases
    return {"wpw": p["wpw"], "wdw": wdw_folded, "bnb": bnb}


# ----------------------------------------------------------------------------
# Pure-JAX reference (unfused, from raw params) for correctness check
# ----------------------------------------------------------------------------
def _resblock_ref(x, p):
    B, C, H, W = x.shape
    s = p["gamma"] * jax.lax.rsqrt(p["var"] + p["eps"])
    b = p["beta"] - p["mean"] * s
    hi = jax.lax.Precision.HIGHEST

    def bsconv(t, wpw, wdw):
        t = jnp.einsum("oc,bchw->bohw", wpw, t, precision=hi)        # pointwise 1x1
        tp = jnp.pad(t, ((0, 0), (0, 0), (1, 1), (1, 1)), mode="reflect")
        acc = jnp.zeros_like(t)
        for ky in range(3):
            for kx in range(3):
                acc = acc + tp[:, :, ky:ky + H, kx:kx + W] * \
                    wdw[:, 3 * ky + kx].reshape(1, C, 1, 1)          # depthwise 3x3
        return acc

    def bn(t, i):
        return t * s[i].reshape(1, C, 1, 1) + b[i].reshape(1, C, 1, 1)

    t = jnp.maximum(bn(bsconv(x, p["wpw"][0], p["wdw"][0]), 0), 0.0)
    t = bn(bsconv(t, p["wpw"][1], p["wdw"][1]), 1)
    return x + t


# ----------------------------------------------------------------------------
if __name__ == "__main__":
    key = jax.random.PRNGKey(0)
    k_x, k_p = jax.random.split(key)

    B, dim, H, W = 2, 16, 16, 32                 # H != W to catch axis mix-ups
    x_nchw = jax.random.normal(k_x, (B, dim, H, W), jnp.float32)
    raw_params = make_resblock_params(k_p, dim)
    params = fold_resblock_params(raw_params)    # build-time BN-scale fold

    fwd = jax.jit(resblock_forward)
    y = fwd(x_nchw, params)
    jax.block_until_ready(y)

    assert y.shape == x_nchw.shape and y.dtype == jnp.float32

    y_ref = _resblock_ref(x_nchw, raw_params)
    np.testing.assert_allclose(np.asarray(y), np.asarray(y_ref), rtol=2e-5, atol=2e-5)

    print("KERNEL_OK")
</pallas_src>

<mosaic_0001>
module attributes {stable_mosaic.version = 11 : i64} {
  func.func @_resblock_kernel(%arg0: i32, %arg1: memref<1x16x512xf32, #tpu.memory_space<vmem>>, %arg2: memref<2x16x16xf32, #tpu.memory_space<vmem>>, %arg3: memref<2x16x9xf32, #tpu.memory_space<vmem>>, %arg4: memref<16x2xf32, #tpu.memory_space<vmem>>, %arg5: memref<1x16x512xf32, #tpu.memory_space<vmem>>) attributes {dimension_semantics = [#tpu.dimension_semantics<parallel>], iteration_bounds = array<i64: 2>, scalar_prefetch = 0 : i64, scratch_operands = 0 : i64, tpu.core_type = #tpu.core_type<tc>, window_params = [{transform_indices = @transform_0, window_bounds = array<i64: 1, 16, 512>}, {pipeline_mode = #tpu.pipeline_mode<synchronous>, transform_indices = @transform_1, window_bounds = array<i64: 2, 16, 16>}, {pipeline_mode = #tpu.pipeline_mode<synchronous>, transform_indices = @transform_2, window_bounds = array<i64: 2, 16, 9>}, {pipeline_mode = #tpu.pipeline_mode<synchronous>, transform_indices = @transform_3, window_bounds = array<i64: 16, 2>}, {transform_indices = @transform_4, window_bounds = array<i64: 1, 16, 512>}]} {
    %c0 = arith.constant 0 : index
    %c0_0 = arith.constant 0 : index
    %c0_1 = arith.constant 0 : index
    %0 = vector.load %arg1[%c0, %c0_0, %c0_1] : memref<1x16x512xf32, #tpu.memory_space<vmem>>, vector<1x16x512xf32>
    %1 = tpu.iota {dimensions = array<i32: 2>} : vector<1x1x512xi32>
    %c32_i32 = arith.constant 32 : i32
    %c0_i32 = arith.constant 0 : i32
    %2 = arith.cmpi eq, %c32_i32, %c0_i32 : i32
    %c1_i32 = arith.constant 1 : i32
    %3 = arith.select %2, %c1_i32, %c32_i32 : i32
    %4 = vector.broadcast %3 : i32 to vector<1x1x512xi32>
    %5 = arith.remsi %1, %4 : vector<1x1x512xi32>
    %c0_i32_2 = arith.constant 0 : i32
    %6 = vector.broadcast %c0_i32_2 : i32 to vector<1x1x512xi32>
    %7 = arith.cmpi ne, %5, %6 : vector<1x1x512xi32>
    %c0_i32_3 = arith.constant 0 : i32
    %8 = vector.broadcast %c0_i32_3 : i32 to vector<1x1x512xi32>
    %9 = arith.cmpi slt, %5, %8 : vector<1x1x512xi32>
    %c0_i32_4 = arith.constant 0 : i32
    %10 = arith.cmpi slt, %3, %c0_i32_4 : i32
    %11 = vector.broadcast %10 : i1 to vector<1x1x512xi1>
    %12 = vector.broadcast %11 : vector<1x1x512xi1> to vector<1x1x512xi1>
    %13 = arith.xori %9, %12 : vector<1x1x512xi1>
    %14 = arith.andi %13, %7 : vector<1x1x512xi1>
    %15 = vector.broadcast %3 : i32 to vector<1x1x512xi32>
    %16 = arith.addi %5, %15 : vector<1x1x512xi32>
    %17 = arith.select %14, %16, %5 : vector<1x1x512xi1>, vector<1x1x512xi32>
    %c0_i32_5 = arith.constant 0 : i32
    %18 = vector.broadcast %c0_i32_5 : i32 to vector<1x1x512xi32>
    %19 = arith.cmpi eq, %17, %18 : vector<1x1x512xi32>
    %c31_i32 = arith.constant 31 : i32
    %20 = vector.broadcast %c31_i32 : i32 to vector<1x1x512xi32>
    %21 = arith.cmpi eq, %17, %20 : vector<1x1x512xi32>
    %c32_i32_6 = arith.constant 32 : i32
    %22 = vector.broadcast %c32_i32_6 : i32 to vector<1x1x512xi32>
    %23 = arith.cmpi slt, %1, %22 : vector<1x1x512xi32>
    %c480_i32 = arith.constant 480 : i32
    %24 = vector.broadcast %c480_i32 : i32 to vector<1x1x512xi32>
    %25 = arith.cmpi sge, %1, %24 : vector<1x1x512xi32>
    %c512_i32 = arith.constant 512 : i32
    %26 = vector.broadcast %c512_i32 : i32 to vector<1x1x512xi32>
    %27 = arith.cmpi slt, %1, %26 : vector<1x1x512xi32>
    %28 = arith.andi %25, %27 : vector<1x1x512xi1>
    %c0_7 = arith.constant 0 : index
    %c0_8 = arith.constant 0 : index
    %c0_9 = arith.constant 0 : index
    %29 = vector.load %arg2[%c0_7, %c0_8, %c0_9] : memref<2x16x16xf32, #tpu.memory_space<vmem>>, vector<2x16x16xf32>
    %c0_10 = arith.constant 0 : index
    %c0_11 = arith.constant 0 : index
    %c0_12 = arith.constant 0 : index
    %30 = vector.load %arg3[%c0_10, %c0_11, %c0_12] : memref<2x16x9xf32, #tpu.memory_space<vmem>>, vector<2x16x9xf32>
    %c0_13 = arith.constant 0 : index
    %c0_14 = arith.constant 0 : index
    %31 = vector.load %arg4[%c0_13, %c0_14] : memref<16x2xf32, #tpu.memory_space<vmem>>, vector<16x2xf32>
    %32 = vector.extract_strided_slice %29 {offsets = [0, 0, 0], sizes = [1, 16, 16], strides = [1, 1, 1]} : vector<2x16x16xf32> to vector<1x16x16xf32>
    %33 = vector.shape_cast %32 : vector<1x16x16xf32> to vector<16x16xf32>
    %34 = vector.shape_cast %33 : vector<16x16xf32> to vector<1x16x16xf32>
    "tpu.trace_start"() <{level = 10 : i32, message = "boc,bcp->bop"}> : () -> ()
    %cst = arith.constant dense<0.000000e+00> : vector<1x16x512xf32>
    %35 = tpu.matmul %34, %0, %cst {dimension_numbers = #tpu.dot_dimension_numbers<[2], [1], [1], [2], [0, 0, 0, 1, 1, 2], [0], [0]>} : vector<1x16x16xf32>, vector<1x16x512xf32>, vector<1x16x512xf32> -> vector<1x16x512xf32>
    "tpu.trace_stop"() : () -> ()
    %36 = vector.extract_strided_slice %30 {offsets = [0, 0, 0], sizes = [1, 16, 9], strides = [1, 1, 1]} : vector<2x16x9xf32> to vector<1x16x9xf32>
    %37 = vector.shape_cast %36 : vector<1x16x9xf32> to vector<16x9xf32>
    %c480_i32_15 = arith.constant 480 : i32
    %38 = tpu.dynamic_rotate %35 by %c480_i32_15 dim 2 : vector<1x16x512xf32>, i32 -> vector<1x16x512xf32>
    %c32_i32_16 = arith.constant 32 : i32
    %39 = tpu.dynamic_rotate %35 by %c32_i32_16 dim 2 : vector<1x16x512xf32>, i32 -> vector<1x16x512xf32>
    %40 = vector.shape_cast %23 : vector<1x1x512xi1> to vector<1x1x512xi1>
    %41 = vector.broadcast %40 : vector<1x1x512xi1> to vector<1x16x512xi1>
    %42 = arith.select %41, %38, %39 : vector<1x16x512xi1>, vector<1x16x512xf32>
    %43 = vector.shape_cast %28 : vector<1x1x512xi1> to vector<1x1x512xi1>
    %44 = vector.broadcast %43 : vector<1x1x512xi1> to vector<1x16x512xi1>
    %45 = arith.select %44, %39, %38 : vector<1x16x512xi1>, vector<1x16x512xf32>
    %c511_i32 = arith.constant 511 : i32
    %46 = tpu.dynamic_rotate %42 by %c511_i32 dim 2 : vector<1x16x512xf32>, i32 -> vector<1x16x512xf32>
    %c1_i32_17 = arith.constant 1 : i32
    %47 = tpu.dynamic_rotate %42 by %c1_i32_17 dim 2 : vector<1x16x512xf32>, i32 -> vector<1x16x512xf32>
    %48 = vector.shape_cast %19 : vector<1x1x512xi1> to vector<1x1x512xi1>
    %49 = vector.broadcast %48 : vector<1x1x512xi1> to vector<1x16x512xi1>
    %50 = arith.select %49, %46, %47 : vector<1x16x512xi1>, vector<1x16x512xf32>
    %51 = vector.shape_cast %21 : vector<1x1x512xi1> to vector<1x1x512xi1>
    %52 = vector.broadcast %51 : vector<1x1x512xi1> to vector<1x16x512xi1>
    %53 = arith.select %52, %47, %46 : vector<1x16x512xi1>, vector<1x16x512xf32>
    %54 = vector.extract_strided_slice %37 {offsets = [0, 0], sizes = [16, 1], strides = [1, 1]} : vector<16x9xf32> to vector<16x1xf32>
    %55 = vector.shape_cast %54 : vector<16x1xf32> to vector<16xf32>
    %56 = vector.shape_cast %55 : vector<16xf32> to vector<1x16x1xf32>
    %57 = vector.broadcast %56 : vector<1x16x1xf32> to vector<1x16x512xf32>
    %58 = arith.mulf %50, %57 : vector<1x16x512xf32>
    %59 = vector.extract_strided_slice %37 {offsets = [0, 1], sizes = [16, 1], strides = [1, 1]} : vector<16x9xf32> to vector<16x1xf32>
    %60 = vector.shape_cast %59 : vector<16x1xf32> to vector<16xf32>
    %61 = vector.shape_cast %60 : vector<16xf32> to vector<1x16x1xf32>
    %62 = vector.broadcast %61 : vector<1x16x1xf32> to vector<1x16x512xf32>
    %63 = arith.mulf %42, %62 : vector<1x16x512xf32>
    %64 = arith.addf %58, %63 : vector<1x16x512xf32>
    %65 = vector.extract_strided_slice %37 {offsets = [0, 2], sizes = [16, 1], strides = [1, 1]} : vector<16x9xf32> to vector<16x1xf32>
    %66 = vector.shape_cast %65 : vector<16x1xf32> to vector<16xf32>
    %67 = vector.shape_cast %66 : vector<16xf32> to vector<1x16x1xf32>
    %68 = vector.broadcast %67 : vector<1x16x1xf32> to vector<1x16x512xf32>
    %69 = arith.mulf %53, %68 : vector<1x16x512xf32>
    %70 = arith.addf %64, %69 : vector<1x16x512xf32>
    %c511_i32_18 = arith.constant 511 : i32
    %71 = tpu.dynamic_rotate %35 by %c511_i32_18 dim 2 : vector<1x16x512xf32>, i32 -> vector<1x16x512xf32>
    %c1_i32_19 = arith.constant 1 : i32
    %72 = tpu.dynamic_rotate %35 by %c1_i32_19 dim 2 : vector<1x16x512xf32>, i32 -> vector<1x16x512xf32>
    %73 = vector.shape_cast %19 : vector<1x1x512xi1> to vector<1x1x512xi1>
    %74 = vector.broadcast %73 : vector<1x1x512xi1> to vector<1x16x512xi1>
    %75 = arith.select %74, %71, %72 : vector<1x16x512xi1>, vector<1x16x512xf32>
    %76 = vector.shape_cast %21 : vector<1x1x512xi1> to vector<1x1x512xi1>
    %77 = vector.broadcast %76 : vector<1x1x512xi1> to vector<1x16x512xi1>
    %78 = arith.select %77, %72, %71 : vector<1x16x512xi1>, vector<1x16x512xf32>
    %79 = vector.extract_strided_slice %37 {offsets = [0, 3], sizes = [16, 1], strides = [1, 1]} : vector<16x9xf32> to vector<16x1xf32>
    %80 = vector.shape_cast %79 : vector<16x1xf32> to vector<16xf32>
    %81 = vector.shape_cast %80 : vector<16xf32> to vector<1x16x1xf32>
    %82 = vector.broadcast %81 : vector<1x16x1xf32> to vector<1x16x512xf32>
    %83 = arith.mulf %75, %82 : vector<1x16x512xf32>
    %84 = arith.addf %70, %83 : vector<1x16x512xf32>
    %85 = vector.extract_strided_slice %37 {offsets = [0, 4], sizes = [16, 1], strides = [1, 1]} : vector<16x9xf32> to vector<16x1xf32>
    %86 = vector.shape_cast %85 : vector<16x1xf32> to vector<16xf32>
    %87 = vector.shape_cast %86 : vector<16xf32> to vector<1x16x1xf32>
    %88 = vector.broadcast %87 : vector<1x16x1xf32> to vector<1x16x512xf32>
    %89 = arith.mulf %35, %88 : vector<1x16x512xf32>
    %90 = arith.addf %84, %89 : vector<1x16x512xf32>
    %91 = vector.extract_strided_slice %37 {offsets = [0, 5], sizes = [16, 1], strides = [1, 1]} : vector<16x9xf32> to vector<16x1xf32>
    %92 = vector.shape_cast %91 : vector<16x1xf32> to vector<16xf32>
    %93 = vector.shape_cast %92 : vector<16xf32> to vector<1x16x1xf32>
    %94 = vector.broadcast %93 : vector<1x16x1xf32> to vector<1x16x512xf32>
    %95 = arith.mulf %78, %94 : vector<1x16x512xf32>
    %96 = arith.addf %90, %95 : vector<1x16x512xf32>
    %c511_i32_20 = arith.constant 511 : i32
    %97 = tpu.dynamic_rotate %45 by %c511_i32_20 dim 2 : vector<1x16x512xf32>, i32 -> vector<1x16x512xf32>
    %c1_i32_21 = arith.constant 1 : i32
    %98 = tpu.dynamic_rotate %45 by %c1_i32_21 dim 2 : vector<1x16x512xf32>, i32 -> vector<1x16x512xf32>
    %99 = vector.shape_cast %19 : vector<1x1x512xi1> to vector<1x1x512xi1>
    %100 = vector.broadcast %99 : vector<1x1x512xi1> to vector<1x16x512xi1>
    %101 = arith.select %100, %97, %98 : vector<1x16x512xi1>, vector<1x16x512xf32>
    %102 = vector.shape_cast %21 : vector<1x1x512xi1> to vector<1x1x512xi1>
    %103 = vector.broadcast %102 : vector<1x1x512xi1> to vector<1x16x512xi1>
    %104 = arith.select %103, %98, %97 : vector<1x16x512xi1>, vector<1x16x512xf32>
    %105 = vector.extract_strided_slice %37 {offsets = [0, 6], sizes = [16, 1], strides = [1, 1]} : vector<16x9xf32> to vector<16x1xf32>
    %106 = vector.shape_cast %105 : vector<16x1xf32> to vector<16xf32>
    %107 = vector.shape_cast %106 : vector<16xf32> to vector<1x16x1xf32>
    %108 = vector.broadcast %107 : vector<1x16x1xf32> to vector<1x16x512xf32>
    %109 = arith.mulf %101, %108 : vector<1x16x512xf32>
    %110 = arith.addf %96, %109 : vector<1x16x512xf32>
    %111 = vector.extract_strided_slice %37 {offsets = [0, 7], sizes = [16, 1], strides = [1, 1]} : vector<16x9xf32> to vector<16x1xf32>
    %112 = vector.shape_cast %111 : vector<16x1xf32> to vector<16xf32>
    %113 = vector.shape_cast %112 : vector<16xf32> to vector<1x16x1xf32>
    %114 = vector.broadcast %113 : vector<1x16x1xf32> to vector<1x16x512xf32>
    %115 = arith.mulf %45, %114 : vector<1x16x512xf32>
    %116 = arith.addf %110, %115 : vector<1x16x512xf32>
    %117 = vector.extract_strided_slice %37 {offsets = [0, 8], sizes = [16, 1], strides = [1, 1]} : vector<16x9xf32> to vector<16x1xf32>
    %118 = vector.shape_cast %117 : vector<16x1xf32> to vector<16xf32>
    %119 = vector.shape_cast %118 : vector<16xf32> to vector<1x16x1xf32>
    %120 = vector.broadcast %119 : vector<1x16x1xf32> to vector<1x16x512xf32>
    %121 = arith.mulf %104, %120 : vector<1x16x512xf32>
    %122 = arith.addf %116, %121 : vector<1x16x512xf32>
    %123 = vector.extract_strided_slice %31 {offsets = [0, 0], sizes = [16, 1], strides = [1, 1]} : vector<16x2xf32> to vector<16x1xf32>
    %124 = vector.shape_cast %123 : vector<16x1xf32> to vector<16xf32>
    %125 = vector.shape_cast %124 : vector<16xf32> to vector<1x16x1xf32>
    %126 = vector.broadcast %125 : vector<1x16x1xf32> to vector<1x16x512xf32>
    %127 = arith.addf %122, %126 : vector<1x16x512xf32>
    %cst_22 = arith.constant 0.000000e+00 : f32
    %128 = vector.broadcast %cst_22 : f32 to vector<1x16x512xf32>
    %129 = arith.maximumf %127, %128 : vector<1x16x512xf32>
    %130 = vector.extract_strided_slice %29 {offsets = [1, 0, 0], sizes = [1, 16, 16], strides = [1, 1, 1]} : vector<2x16x16xf32> to vector<1x16x16xf32>
    %131 = vector.shape_cast %130 : vector<1x16x16xf32> to vector<16x16xf32>
    %132 = vector.shape_cast %131 : vector<16x16xf32> to vector<1x16x16xf32>
    "tpu.trace_start"() <{level = 10 : i32, message = "boc,bcp->bop"}> : () -> ()
    %cst_23 = arith.constant dense<0.000000e+00> : vector<1x16x512xf32>
    %133 = tpu.matmul %132, %129, %cst_23 {dimension_numbers = #tpu.dot_dimension_numbers<[2], [1], [1], [2], [0, 0, 0, 1, 1, 2], [0], [0]>} : vector<1x16x16xf32>, vector<1x16x512xf32>, vector<1x16x512xf32> -> vector<1x16x512xf32>
    "tpu.trace_stop"() : () -> ()
    %134 = vector.extract_strided_slice %30 {offsets = [1, 0, 0], sizes = [1, 16, 9], strides = [1, 1, 1]} : vector<2x16x9xf32> to vector<1x16x9xf32>
    %135 = vector.shape_cast %134 : vector<1x16x9xf32> to vector<16x9xf32>
    %c480_i32_24 = arith.constant 480 : i32
    %136 = tpu.dynamic_rotate %133 by %c480_i32_24 dim 2 : vector<1x16x512xf32>, i32 -> vector<1x16x512xf32>
    %c32_i32_25 = arith.constant 32 : i32
    %137 = tpu.dynamic_rotate %133 by %c32_i32_25 dim 2 : vector<1x16x512xf32>, i32 -> vector<1x16x512xf32>
    %138 = vector.shape_cast %23 : vector<1x1x512xi1> to vector<1x1x512xi1>
    %139 = vector.broadcast %138 : vector<1x1x512xi1> to vector<1x16x512xi1>
    %140 = arith.select %139, %136, %137 : vector<1x16x512xi1>, vector<1x16x512xf32>
    %141 = vector.shape_cast %28 : vector<1x1x512xi1> to vector<1x1x512xi1>
    %142 = vector.broadcast %141 : vector<1x1x512xi1> to vector<1x16x512xi1>
    %143 = arith.select %142, %137, %136 : vector<1x16x512xi1>, vector<1x16x512xf32>
    %c511_i32_26 = arith.constant 511 : i32
    %144 = tpu.dynamic_rotate %140 by %c511_i32_26 dim 2 : vector<1x16x512xf32>, i32 -> vector<1x16x512xf32>
    %c1_i32_27 = arith.constant 1 : i32
    %145 = tpu.dynamic_rotate %140 by %c1_i32_27 dim 2 : vector<1x16x512xf32>, i32 -> vector<1x16x512xf32>
    %146 = vector.shape_cast %19 : vector<1x1x512xi1> to vector<1x1x512xi1>
    %147 = vector.broadcast %146 : vector<1x1x512xi1> to vector<1x16x512xi1>
    %148 = arith.select %147, %144, %145 : vector<1x16x512xi1>, vector<1x16x512xf32>
    %149 = vector.shape_cast %21 : vector<1x1x512xi1> to vector<1x1x512xi1>
    %150 = vector.broadcast %149 : vector<1x1x512xi1> to vector<1x16x512xi1>
    %151 = arith.select %150, %145, %144 : vector<1x16x512xi1>, vector<1x16x512xf32>
    %152 = vector.extract_strided_slice %135 {offsets = [0, 0], sizes = [16, 1], strides = [1, 1]} : vector<16x9xf32> to vector<16x1xf32>
    %153 = vector.shape_cast %152 : vector<16x1xf32> to vector<16xf32>
    %154 = vector.shape_cast %153 : vector<16xf32> to vector<1x16x1xf32>
    %155 = vector.broadcast %154 : vector<1x16x1xf32> to vector<1x16x512xf32>
    %156 = arith.mulf %148, %155 : vector<1x16x512xf32>
    %157 = vector.extract_strided_slice %135 {offsets = [0, 1], sizes = [16, 1], strides = [1, 1]} : vector<16x9xf32> to vector<16x1xf32>
    %158 = vector.shape_cast %157 : vector<16x1xf32> to vector<16xf32>
    %159 = vector.shape_cast %158 : vector<16xf32> to vector<1x16x1xf32>
    %160 = vector.broadcast %159 : vector<1x16x1xf32> to vector<1x16x512xf32>
    %161 = arith.mulf %140, %160 : vector<1x16x512xf32>
    %162 = arith.addf %156, %161 : vector<1x16x512xf32>
    %163 = vector.extract_strided_slice %135 {offsets = [0, 2], sizes = [16, 1], strides = [1, 1]} : vector<16x9xf32> to vector<16x1xf32>
    %164 = vector.shape_cast %163 : vector<16x1xf32> to vector<16xf32>
    %165 = vector.shape_cast %164 : vector<16xf32> to vector<1x16x1xf32>
    %166 = vector.broadcast %165 : vector<1x16x1xf32> to vector<1x16x512xf32>
    %167 = arith.mulf %151, %166 : vector<1x16x512xf32>
    %168 = arith.addf %162, %167 : vector<1x16x512xf32>
    %c511_i32_28 = arith.constant 511 : i32
    %169 = tpu.dynamic_rotate %133 by %c511_i32_28 dim 2 : vector<1x16x512xf32>, i32 -> vector<1x16x512xf32>
    %c1_i32_29 = arith.constant 1 : i32
    %170 = tpu.dynamic_rotate %133 by %c1_i32_29 dim 2 : vector<1x16x512xf32>, i32 -> vector<1x16x512xf32>
    %171 = vector.shape_cast %19 : vector<1x1x512xi1> to vector<1x1x512xi1>
    %172 = vector.broadcast %171 : vector<1x1x512xi1> to vector<1x16x512xi1>
    %173 = arith.select %172, %169, %170 : vector<1x16x512xi1>, vector<1x16x512xf32>
    %174 = vector.shape_cast %21 : vector<1x1x512xi1> to vector<1x1x512xi1>
    %175 = vector.broadcast %174 : vector<1x1x512xi1> to vector<1x16x512xi1>
    %176 = arith.select %175, %170, %169 : vector<1x16x512xi1>, vector<1x16x512xf32>
    %177 = vector.extract_strided_slice %135 {offsets = [0, 3], sizes = [16, 1], strides = [1, 1]} : vector<16x9xf32> to vector<16x1xf32>
    %178 = vector.shape_cast %177 : vector<16x1xf32> to vector<16xf32>
    %179 = vector.shape_cast %178 : vector<16xf32> to vector<1x16x1xf32>
    %180 = vector.broadcast %179 : vector<1x16x1xf32> to vector<1x16x512xf32>
    %181 = arith.mulf %173, %180 : vector<1x16x512xf32>
    %182 = arith.addf %168, %181 : vector<1x16x512xf32>
    %183 = vector.extract_strided_slice %135 {offsets = [0, 4], sizes = [16, 1], strides = [1, 1]} : vector<16x9xf32> to vector<16x1xf32>
    %184 = vector.shape_cast %183 : vector<16x1xf32> to vector<16xf32>
    %185 = vector.shape_cast %184 : vector<16xf32> to vector<1x16x1xf32>
    %186 = vector.broadcast %185 : vector<1x16x1xf32> to vector<1x16x512xf32>
    %187 = arith.mulf %133, %186 : vector<1x16x512xf32>
    %188 = arith.addf %182, %187 : vector<1x16x512xf32>
    %189 = vector.extract_strided_slice %135 {offsets = [0, 5], sizes = [16, 1], strides = [1, 1]} : vector<16x9xf32> to vector<16x1xf32>
    %190 = vector.shape_cast %189 : vector<16x1xf32> to vector<16xf32>
    %191 = vector.shape_cast %190 : vector<16xf32> to vector<1x16x1xf32>
    %192 = vector.broadcast %191 : vector<1x16x1xf32> to vector<1x16x512xf32>
    %193 = arith.mulf %176, %192 : vector<1x16x512xf32>
    %194 = arith.addf %188, %193 : vector<1x16x512xf32>
    %c511_i32_30 = arith.constant 511 : i32
    %195 = tpu.dynamic_rotate %143 by %c511_i32_30 dim 2 : vector<1x16x512xf32>, i32 -> vector<1x16x512xf32>
    %c1_i32_31 = arith.constant 1 : i32
    %196 = tpu.dynamic_rotate %143 by %c1_i32_31 dim 2 : vector<1x16x512xf32>, i32 -> vector<1x16x512xf32>
    %197 = vector.shape_cast %19 : vector<1x1x512xi1> to vector<1x1x512xi1>
    %198 = vector.broadcast %197 : vector<1x1x512xi1> to vector<1x16x512xi1>
    %199 = arith.select %198, %195, %196 : vector<1x16x512xi1>, vector<1x16x512xf32>
    %200 = vector.shape_cast %21 : vector<1x1x512xi1> to vector<1x1x512xi1>
    %201 = vector.broadcast %200 : vector<1x1x512xi1> to vector<1x16x512xi1>
    %202 = arith.select %201, %196, %195 : vector<1x16x512xi1>, vector<1x16x512xf32>
    %203 = vector.extract_strided_slice %135 {offsets = [0, 6], sizes = [16, 1], strides = [1, 1]} : vector<16x9xf32> to vector<16x1xf32>
    %204 = vector.shape_cast %203 : vector<16x1xf32> to vector<16xf32>
    %205 = vector.shape_cast %204 : vector<16xf32> to vector<1x16x1xf32>
    %206 = vector.broadcast %205 : vector<1x16x1xf32> to vector<1x16x512xf32>
    %207 = arith.mulf %199, %206 : vector<1x16x512xf32>
    %208 = arith.addf %194, %207 : vector<1x16x512xf32>
    %209 = vector.extract_strided_slice %135 {offsets = [0, 7], sizes = [16, 1], strides = [1, 1]} : vector<16x9xf32> to vector<16x1xf32>
    %210 = vector.shape_cast %209 : vector<16x1xf32> to vector<16xf32>
    %211 = vector.shape_cast %210 : vector<16xf32> to vector<1x16x1xf32>
    %212 = vector.broadcast %211 : vector<1x16x1xf32> to vector<1x16x512xf32>
    %213 = arith.mulf %143, %212 : vector<1x16x512xf32>
    %214 = arith.addf %208, %213 : vector<1x16x512xf32>
    %215 = vector.extract_strided_slice %135 {offsets = [0, 8], sizes = [16, 1], strides = [1, 1]} : vector<16x9xf32> to vector<16x1xf32>
    %216 = vector.shape_cast %215 : vector<16x1xf32> to vector<16xf32>
    %217 = vector.shape_cast %216 : vector<16xf32> to vector<1x16x1xf32>
    %218 = vector.broadcast %217 : vector<1x16x1xf32> to vector<1x16x512xf32>
    %219 = arith.mulf %202, %218 : vector<1x16x512xf32>
    %220 = arith.addf %214, %219 : vector<1x16x512xf32>
    %221 = vector.extract_strided_slice %31 {offsets = [0, 1], sizes = [16, 1], strides = [1, 1]} : vector<16x2xf32> to vector<16x1xf32>
    %222 = vector.shape_cast %221 : vector<16x1xf32> to vector<16xf32>
    %223 = vector.shape_cast %222 : vector<16xf32> to vector<1x16x1xf32>
    %224 = vector.broadcast %223 : vector<1x16x1xf32> to vector<1x16x512xf32>
    %225 = arith.addf %220, %224 : vector<1x16x512xf32>
    %226 = arith.addf %0, %225 : vector<1x16x512xf32>
    %c0_32 = arith.constant 0 : index
    %c0_33 = arith.constant 0 : index
    %c0_34 = arith.constant 0 : index
    %227 = vector.load %arg5[%c0_32, %c0_33, %c0_34] : memref<1x16x512xf32, #tpu.memory_space<vmem>>, vector<1x16x512xf32>
    tpu.vector_store %arg5[%c0_32, %c0_33, %c0_34], %226 {strides = array<i32>} : memref<1x16x512xf32, #tpu.memory_space<vmem>>, vector<1x16x512xf32>,
    return
  }
  func.func @transform_0(%arg0: i32) -> (i32, i32, i32) {
    %c0_i32 = arith.constant 0 : i32
    %c0_i32_0 = arith.constant 0 : i32
    %c0_i32_1 = arith.constant 0 : i32
    return %arg0, %c0_i32, %c0_i32_0 : i32, i32, i32
  }
  func.func @transform_1(%arg0: i32) -> (i32, i32, i32) {
    %c0_i32 = arith.constant 0 : i32
    %c0_i32_0 = arith.constant 0 : i32
    %c0_i32_1 = arith.constant 0 : i32
    %c0_i32_2 = arith.constant 0 : i32
    return %c0_i32, %c0_i32_0, %c0_i32_1 : i32, i32, i32
  }
  func.func @transform_2(%arg0: i32) -> (i32, i32, i32) {
    %c0_i32 = arith.constant 0 : i32
    %c0_i32_0 = arith.constant 0 : i32
    %c0_i32_1 = arith.constant 0 : i32
    %c0_i32_2 = arith.constant 0 : i32
    return %c0_i32, %c0_i32_0, %c0_i32_1 : i32, i32, i32
  }
  func.func @transform_3(%arg0: i32) -> (i32, i32) {
    %c0_i32 = arith.constant 0 : i32
    %c0_i32_0 = arith.constant 0 : i32
    %c0_i32_1 = arith.constant 0 : i32
    return %c0_i32, %c0_i32_0 : i32, i32
  }
  func.func @transform_4(%arg0: i32) -> (i32, i32, i32) {
    %c0_i32 = arith.constant 0 : i32
    %c0_i32_0 = arith.constant 0 : i32
    %c0_i32_1 = arith.constant 0 : i32
    return %arg0, %c0_i32, %c0_i32_0 : i32, i32, i32
  }
}

</mosaic_0001>

<llo_original>
// kernel: resblock_forward.1
$region0: #{resblock_forward.1}
  #allocation0 [shape = 'u32[]', space=smem, size = 0x4, offset = 0x4, fixed_abs, tag = 'smem constant byte address 0x4 - core index']
  #allocation1 [shape = 'u32[72,128]{1,0:T(1,128)}', space=vmem, size = 0x9000, scoped, tag = 'internal scratch']
  %s0 = inlined_call_operand.vmem [shape: f32[2,16,512], index: 0, kind: input, shape index: {}]
  %s1 = inlined_call_operand.vmem [shape: f32[2,16,16], index: 1, kind: input, shape index: {}]
  %s2 = inlined_call_operand.vmem [shape: f32[2,16,9], index: 2, kind: input, shape index: {}]
  %s3 = inlined_call_operand.vmem [shape: f32[16,2], index: 3, kind: input, shape index: {}]
  %s4 = inlined_call_operand.vmem [shape: f32[2,16,512], index: 4, kind: output, shape index: {}]
  %s5 = sld [smem:[#allocation0]]
  $region49: #{resblock_forward.1} parent=0
    _
  %s7 = ssub.s32 1, %s5
  %s8 = scalar_select 0, %s7, %s5
  loop: start=0, step=1, limit=4
  $region2: #{resblock_forward.1} parent=0 // loop_pre_header
    _
  $region3: #{resblock_forward.1} parent=0 // loop_header
    %s10 = sphi 0, %s14
    %p11 = scmp.ge.s32.totalorder %s10, 4
    %s20 = sphi 0, %s22
    %s23 = sphi 0, %s20
    %s24 = sphi 0, %s23
    %s40 = sphi 0, %s24
    %s44 = sphi 0, %s44
    %s46 = sphi 0, %s44
    %s47 = sphi 0, %s46
    %s61 = sphi 0, %s47
    %s65 = sphi 0, %s65
    %s67 = sphi 0, %s65
    %s68 = sphi 0, %s67
    %s82 = sphi 0, %s68
    %s86 = sphi 0, %s86
    %s88 = sphi 0, %s86
    %s89 = sphi 0, %s88
    %s103 = sphi 0, %s89
    %s109 = sphi 0, %s111
    %s112 = sphi 0, %s109
    %s113 = sphi 0, %s112
    %s129 = sphi 0, %s113
  $region4: #{resblock_forward.1} parent=0 // loop_header_branch
    %13 = sbr.rel (%p11) target = $region8
  $region5: #{resblock_forward.1} parent=0 // loop_body
    %s15 = ssub.s32 %s10, 1
    %s16 = ssub.s32 %s10, 2
    %s17 = sadd.s32 %s10, 1
    %s18 = ssub.s32 %s10, %s17
    %p19 = scmp.eq.s32.totalorder %s18, 0
    %s21 = sadd.s32 %s20, 1
    %s22 = scalar_select %p19, %s20, %s21
    %p25 = pneg %p19
    %p26 = scmp.eq.s32.totalorder %s10, 1
    %p27 = por %p25, %p26
    %p28 = scmp.ne.s32.totalorder %s20, %s23
    %p29 = scmp.eq.s32.totalorder %s10, 0
    %p30 = por %p28, %p29
    %p31 = scmp.ne.s32.totalorder %s20, %s23
    %p32 = scmp.eq.s32.totalorder %s15, 1
    %p33 = por %p31, %p32
    %p34 = scmp.ne.s32.totalorder %s23, %s24
    %p35 = scmp.eq.s32.totalorder %s15, 0
    %p36 = por %p34, %p35
    %p37 = scmp.ne.s32.totalorder %s23, %s24
    %p38 = scmp.eq.s32.totalorder %s16, 1
    %p39 = por %p37, %p38
    %p41 = scmp.ne.s32.totalorder %s24, %s40
    %p42 = scmp.eq.s32.totalorder %s16, 0
    %p43 = por %p41, %p42
    %s45 = sadd.s32 %s44, 1
    %p48 = scmp.eq.s32.totalorder %s10, 1
    %p49 = scmp.ne.s32.totalorder %s44, %s46
    %p50 = scmp.eq.s32.totalorder %s10, 0
    %p51 = por %p49, %p50
    %p52 = scmp.ne.s32.totalorder %s44, %s46
    %p53 = scmp.eq.s32.totalorder %s15, 1
    %p54 = por %p52, %p53
    %p55 = scmp.ne.s32.totalorder %s46, %s47
    %p56 = scmp.eq.s32.totalorder %s15, 0
    %p57 = por %p55, %p56
    %p58 = scmp.ne.s32.totalorder %s46, %s47
    %p59 = scmp.eq.s32.totalorder %s16, 1
    %p60 = por %p58, %p59
    %p62 = scmp.ne.s32.totalorder %s47, %s61
    %p63 = scmp.eq.s32.totalorder %s16, 0
    %p64 = por %p62, %p63
    %s66 = sadd.s32 %s65, 1
    %p69 = scmp.eq.s32.totalorder %s10, 1
    %p70 = scmp.ne.s32.totalorder %s65, %s67
    %p71 = scmp.eq.s32.totalorder %s10, 0
    %p72 = por %p70, %p71
    %p73 = scmp.ne.s32.totalorder %s65, %s67
    %p74 = scmp.eq.s32.totalorder %s15, 1
    %p75 = por %p73, %p74
    %p76 = scmp.ne.s32.totalorder %s67, %s68
    %p77 = scmp.eq.s32.totalorder %s15, 0
    %p78 = por %p76, %p77
    %p79 = scmp.ne.s32.totalorder %s67, %s68
    %p80 = scmp.eq.s32.totalorder %s16, 1
    %p81 = por %p79, %p80
    %p83 = scmp.ne.s32.totalorder %s68, %s82
    %p84 = scmp.eq.s32.totalorder %s16, 0
    %p85 = por %p83, %p84
    %s87 = sadd.s32 %s86, 1
    %p90 = scmp.eq.s32.totalorder %s10, 1
    %p91 = scmp.ne.s32.totalorder %s86, %s88
    %p92 = scmp.eq.s32.totalorder %s10, 0
    %p93 = por %p91, %p92
    %p94 = scmp.ne.s32.totalorder %s86, %s88
    %p95 = scmp.eq.s32.totalorder %s15, 1
    %p96 = por %p94, %p95
    %p97 = scmp.ne.s32.totalorder %s88, %s89
    %p98 = scmp.eq.s32.totalorder %s15, 0
    %p99 = por %p97, %p98
    %p100 = scmp.ne.s32.totalorder %s88, %s89
    %p101 = scmp.eq.s32.totalorder %s16, 1
    %p102 = por %p100, %p101
    %p104 = scmp.ne.s32.totalorder %s89, %s103
    %p105 = scmp.eq.s32.totalorder %s16, 0
    %p106 = por %p104, %p105
    %s107 = ssub.s32 %s10, %s17
    %p108 = scmp.eq.s32.totalorder %s107, 0
    %s110 = sadd.s32 %s109, 1
    %s111 = scalar_select %p108, %s109, %s110
    %p114 = pneg %p108
    %p115 = scmp.eq.s32.totalorder %s10, 1
    %p116 = por %p114, %p115
    %p117 = scmp.ne.s32.totalorder %s109, %s112
    %p118 = scmp.eq.s32.totalorder %s10, 0
    %p119 = por %p117, %p118
    %p120 = scmp.ne.s32.totalorder %s109, %s112
    %p121 = scmp.eq.s32.totalorder %s15, 1
    %p122 = por %p120, %p121
    %p123 = scmp.ne.s32.totalorder %s112, %s113
    %p124 = scmp.eq.s32.totalorder %s15, 0
    %p125 = por %p123, %p124
    %p126 = scmp.ne.s32.totalorder %s112, %s113
    %p127 = scmp.eq.s32.totalorder %s16, 1
    %p128 = por %p126, %p127
    %p130 = scmp.ne.s32.totalorder %s113, %s129
    %p131 = scmp.eq.s32.totalorder %s16, 0
    %p132 = por %p130, %p131
    %p133 = scmp.le.s32.totalorder 1, %s10
    %p134 = scmp.lt.s32.totalorder %s10, 3
    %p135 = pnand %p133, %p134
    %p136 = pneg %p135
    // Predicated region
    $region9: #{resblock_forward.1} parent=5 // pred_check
      _
    $region10: #{resblock_forward.1} parent=5 // pred_check_branch
      %138 = sbr.rel (%p135) target = $region12
    $region11: #{resblock_forward.1} parent=5 // pred_region
      %s139 = ssub.s32 %s10, 1
      // Predicated region
      $region13: #{resblock_forward.1} parent=11 // pred_check
        %p140 = pneg %p57
      $region14: #{resblock_forward.1} parent=11 // pred_check_branch
        %142 = sbr.rel (%p140) target = $region16
      $region15: #{resblock_forward.1} parent=11 // pred_region
        _
      $region16: #{resblock_forward.1} parent=11 // pred_fallthru
        _
      // Predicated region
      $region17: #{resblock_forward.1} parent=11 // pred_check
        %p143 = pneg %p78
      $region18: #{resblock_forward.1} parent=11 // pred_check_branch
        %145 = sbr.rel (%p143) target = $region20
      $region19: #{resblock_forward.1} parent=11 // pred_region
        _
      $region20: #{resblock_forward.1} parent=11 // pred_fallthru
        _
      // Predicated region
      $region21: #{resblock_forward.1} parent=11 // pred_check
        %p146 = pneg %p99
      $region22: #{resblock_forward.1} parent=11 // pred_check_branch
        %148 = sbr.rel (%p146) target = $region24
      $region23: #{resblock_forward.1} parent=11 // pred_region
        _
      $region24: #{resblock_forward.1} parent=11 // pred_fallthru
        _
    $region12: #{resblock_forward.1} parent=5 // pred_fallthru
      _
    %p149 = scmp.lt.s32.totalorder %s10, 2
    // Predicated region
    $region25: #{resblock_forward.1} parent=5 // pred_check
      %p150 = pneg %p149
    $region26: #{resblock_forward.1} parent=5 // pred_check_branch
      %152 = sbr.rel (%p150) target = $region28
    $region27: #{resblock_forward.1} parent=5 // pred_region
      // Predicated region
      $region29: #{resblock_forward.1} parent=27 // pred_check
        %p153 = pneg %p30
      $region30: #{resblock_forward.1} parent=27 // pred_check_branch
        %155 = sbr.rel (%p153) target = $region32
      $region31: #{resblock_forward.1} parent=27 // pred_region
        %p156 = scmp.lt.s32.totalorder %s10, 1
        %s157 = scalar_select %p156, %s10, 1
        %s158 = smul.addr %s157, 8
        %s159 = smul.addr %s158, 8
        %s160 = scalar_lea.vmem %s0, %s159
      $region32: #{resblock_forward.1} parent=27 // pred_fallthru
        _
    $region28: #{resblock_forward.1} parent=5 // pred_fallthru
      _
    %p161 = scmp.le.s32.totalorder 1, %s10
    %p162 = scmp.lt.s32.totalorder %s10, 3
    %p163 = pnand %p161, %p162
    %p164 = pneg %p163
    // Predicated region
    $region33: #{resblock_forward.1} parent=5 // pred_check
      _
    $region34: #{resblock_forward.1} parent=5 // pred_check_branch
      %166 = sbr.rel (%p163) target = $region36
    $region35: #{resblock_forward.1} parent=5 // pred_region
      %s167 = ssub.s32 %s10, 1
      %p168 = scmp.lt.s32.totalorder %s15, 1
      %s169 = scalar_select %p168, %s15, 1
      %s170 = smul.addr %s169, 8
      %s171 = smul.addr %s170, 8
      %s172 = scalar_lea.vmem %s0, %s171
      %p173 = pneg %p36
      %p174 = pneg %p33
      %p175 = pneg %p57
      %p176 = pneg %p54
      %p177 = pneg %p78
      %p178 = pneg %p75
      %p179 = pneg %p99
      %p180 = pneg %p96
      %p181 = pneg %p125
      %p182 = pneg %p122
      %p183 = scmp.lt.s32.totalorder %s15, 1
      %s184 = scalar_select %p183, %s15, 1
      %s185 = smul.addr %s184, 8
      %s186 = smul.addr %s185, 8
      %s187 = scalar_lea.vmem %s4, %s186
      %p188 = scmp.lt.s32.totalorder %s15, 1
      %s189 = scalar_select %p188, %s15, 1
      %s190 = smul.addr %s189, 8
      %s191 = smul.addr %s190, 8
      %s192 = scalar_lea.vmem %s0, %s191
      %p193 = scmp.lt.s32.totalorder %s15, 1
      %s194 = scalar_select %p193, %s15, 1
      %s195 = smul.addr %s194, 8
      %s196 = smul.addr %s195, 8
      %s197 = scalar_lea.vmem %s4, %s196
      %v198 = vld [vmem:[%s192] sm:$0xff]
      %v199 = vld [vmem:[%s192 + $0x8] sm:$0xff]
      %v200 = vld [vmem:[%s192 + $0x10] sm:$0xff]
      %v201 = vld [vmem:[%s192 + $0x18] sm:$0xff]
      %v202 = vld [vmem:[%s192 + $0x20] sm:$0xff]
      %v203 = vld [vmem:[%s192 + $0x28] sm:$0xff]
      %v204 = vld [vmem:[%s192 + $0x30] sm:$0xff]
      %v205 = vld [vmem:[%s192 + $0x38] sm:$0xff]
      %v206 = vlaneseq
      %v207 = vand.u32 %v206, 127
      %v208 = vadd.s32 %v207, 128
      %v209 = vadd.s32 %v207, 256
      %v210 = vadd.s32 %v207, 384
      %vm211 = vcmp.lt.s32.totalorder %v207, 0
      %v212 = vsub.s32 0, %v207
      %v213 = vsel %vm211, %v212, %v207
      %v214 = vshrl.u32 %v213, 5
      %v215 = vand.u32 %v213, 31
      %v216 = vsub.s32 0, %v215
      %v217 = vsel %vm211, %v216, %v215
      %vm218 = vcmp.lt.s32.totalorder %v208, 0
      %v219 = vsub.s32 0, %v208
      %v220 = vsel %vm218, %v219, %v208
      %v221 = vshrl.u32 %v220, 5
      %v222 = vand.u32 %v220, 31
      %v223 = vsub.s32 0, %v222
      %v224 = vsel %vm218, %v223, %v222
      %vm225 = vcmp.lt.s32.totalorder %v209, 0
      %v226 = vsub.s32 0, %v209
      %v227 = vsel %vm225, %v226, %v209
      %v228 = vshrl.u32 %v227, 5
      %v229 = vand.u32 %v227, 31
      %v230 = vsub.s32 0, %v229
      %v231 = vsel %vm225, %v230, %v229
      %vm232 = vcmp.lt.s32.totalorder %v210, 0
      %v233 = vsub.s32 0, %v210
      %v234 = vsel %vm232, %v233, %v210
      %v235 = vshrl.u32 %v234, 5
      %v236 = vand.u32 %v234, 31
      %v237 = vsub.s32 0, %v236
      %v238 = vsel %vm232, %v237, %v236
      %vm239 = vcmp.ne.s32.totalorder %v217, 0
      %vm240 = vcmp.ne.s32.totalorder %v224, 0
      %vm241 = vcmp.ne.s32.totalorder %v231, 0
      %vm242 = vcmp.ne.s32.totalorder %v238, 0
      %vm243 = vcmp.lt.s32.totalorder %v217, 0
      %vm244 = vcmp.lt.s32.totalorder %v224, 0
      %vm245 = vcmp.lt.s32.totalorder %v231, 0
      %vm246 = vcmp.lt.s32.totalorder %v238, 0
      %vm247 = vmand %vm243, %vm239
      %vm248 = vmand %vm244, %vm240
      %vm249 = vmand %vm245, %vm241
      %vm250 = vmand %vm246, %vm242
      %v251 = vadd.s32 %v217, 32
      %v252 = vadd.s32 %v224, 32
      %v253 = vadd.s32 %v231, 32
      %v254 = vadd.s32 %v238, 32
      %v255 = vsel %vm247, %v251, %v217
      %v256 = vsel %vm248, %v252, %v224
      %v257 = vsel %vm249, %v253, %v231
      %v258 = vsel %vm250, %v254, %v238
      %vm259 = vcmp.eq.s32.totalorder %v255, 0
      %vm260 = vcmp.eq.s32.totalorder %v256, 0
      %vm261 = vcmp.eq.s32.totalorder %v257, 0
      %vm262 = vcmp.eq.s32.totalorder %v258, 0
      %vm263 = vcmp.eq.s32.totalorder %v255, 31
      %vm264 = vcmp.eq.s32.totalorder %v256, 31
      %vm265 = vcmp.eq.s32.totalorder %v257, 31
      %vm266 = vcmp.eq.s32.totalorder %v258, 31
      %vm267 = vcmp.lt.s32.totalorder %v207, 32
      %vm268 = vcmp.lt.s32.totalorder %v208, 32
      %vm269 = vcmp.lt.s32.totalorder %v209, 32
      %vm270 = vcmp.lt.s32.totalorder %v210, 32
      %vm271 = vcmp.ge.s32.totalorder %v207, 480
      %vm272 = vcmp.ge.s32.totalorder %v208, 480
      %vm273 = vcmp.ge.s32.totalorder %v209, 480
      %vm274 = vcmp.ge.s32.totalorder %v210, 480
      %vm275 = vcmp.lt.s32.totalorder %v207, 512
      %vm276 = vcmp.lt.s32.totalorder %v208, 512
      %vm277 = vcmp.lt.s32.totalorder %v209, 512
      %vm278 = vcmp.lt.s32.totalorder %v210, 512
      %vm279 = vmand %vm271, %vm275
      %vm280 = vmand %vm272, %vm276
      %vm281 = vmand %vm273, %vm277
      %vm282 = vmand %vm274, %vm278
      %v283 = vld [vmem:[%s1] sm:$0xff]
      %v284 = vld [vmem:[%s1 + $0x8] sm:$0xff]
      %v285 = vld [vmem:[%s1 + $0x10] sm:$0xff]
      %v286 = vld [vmem:[%s1 + $0x18] sm:$0xff]
      %v287 = vld [vmem:[%s2] sm:$0xff]
      %v288 = vld [vmem:[%s2 + $0x8] sm:$0xff]
      %v289 = vld [vmem:[%s2 + $0x10] sm:$0xff]
      %v290 = vld [vmem:[%s2 + $0x18] sm:$0xff]
      %v291 = vld [vmem:[%s3] sm:$0xff]
      %v292 = vld [vmem:[%s3 + $0x8] sm:$0xff]
      %vm293 = vcmask 130048
      %v295 = vsel %vm293, %v283, 0
      %v298 = vsel %vm293, %v284, 0
      %300 = vmatpush.msra.mxu0 0.0
      %301 = vmatpush.msra.mxu0 0.0
      %302 = vmatpush.msra.mxu0 0.0
      %303 = vmatpush.msra.mxu0 0.0
      %304 = vmatpush.msra.mxu0 0.0
      %305 = vmatpush.msra.mxu0 0.0
      %306 = vmatpush.msra.mxu0 0.0
      %307 = vmatpush.msra.mxu0 0.0
      %308 = vmatpush.msra.mxu0 0.0
      %309 = vmatpush.msra.mxu0 0.0
      %310 = vmatpush.msra.mxu0 0.0
      %311 = vmatpush.msra.mxu0 0.0
      %312 = vmatpush.msra.mxu0 0.0
      %313 = vmatpush.msra.mxu0 0.0
      %314 = vmatpush.msra.mxu0 %v202
      %315 = vmatpush.msra.mxu0 %v198
      %316 = vmatmul.f32.gmra.mxu0 %v295
      %v317 = vpop.f32.mrf.mxu0
      %v318 = vadd.f32 0.0, %v317
      %319 = vmatmul.f32.gmra.mxu0 %v298
      %v320 = vpop.f32.mrf.mxu0
      %v321 = vadd.f32 0.0, %v320
      %322 = vdwg.mxu0
      %323 = vmatpush.msra.mxu0 0.0
      %324 = vmatpush.msra.mxu0 0.0
      %325 = vmatpush.msra.mxu0 0.0
      %326 = vmatpush.msra.mxu0 0.0
      %327 = vmatpush.msra.mxu0 0.0
      %328 = vmatpush.msra.mxu0 0.0
      %329 = vmatpush.msra.mxu0 0.0
      %330 = vmatpush.msra.mxu0 0.0
      %331 = vmatpush.msra.mxu0 0.0
      %332 = vmatpush.msra.mxu0 0.0
      %333 = vmatpush.msra.mxu0 0.0
      %334 = vmatpush.msra.mxu0 0.0
      %335 = vmatpush.msra.mxu0 0.0
      %336 = vmatpush.msra.mxu0 0.0
      %337 = vmatpush.msra.mxu0 %v203
      %338 = vmatpush.msra.mxu0 %v199
      %339 = vmatmul.f32.gmra.mxu0 %v295
      %v340 = vpop.f32.mrf.mxu0
      %v341 = vadd.f32 0.0, %v340
      %342 = vmatmul.f32.gmra.mxu0 %v298
      %v343 = vpop.f32.mrf.mxu0
      %v344 = vadd.f32 0.0, %v343
      %345 = vdwg.mxu0
      %346 = vmatpush.msra.mxu0 0.0
      %347 = vmatpush.msra.mxu0 0.0
      %348 = vmatpush.msra.mxu0 0.0
      %349 = vmatpush.msra.mxu0 0.0
      %350 = vmatpush.msra.mxu0 0.0
      %351 = vmatpush.msra.mxu0 0.0
      %352 = vmatpush.msra.mxu0 0.0
      %353 = vmatpush.msra.mxu0 0.0
      %354 = vmatpush.msra.mxu0 0.0
      %355 = vmatpush.msra.mxu0 0.0
      %356 = vmatpush.msra.mxu0 0.0
      %357 = vmatpush.msra.mxu0 0.0
      %358 = vmatpush.msra.mxu0 0.0
      %359 = vmatpush.msra.mxu0 0.0
      %360 = vmatpush.msra.mxu0 %v204
      %361 = vmatpush.msra.mxu0 %v200
      %362 = vmatmul.f32.gmra.mxu0 %v295
      %v363 = vpop.f32.mrf.mxu0
      %v364 = vadd.f32 0.0, %v363
      %365 = vmatmul.f32.gmra.mxu0 %v298
      %v366 = vpop.f32.mrf.mxu0
      %v367 = vadd.f32 0.0, %v366
      %368 = vdwg.mxu0
      %369 = vmatpush.msra.mxu0 0.0
      %370 = vmatpush.msra.mxu0 0.0
      %371 = vmatpush.msra.mxu0 0.0
      %372 = vmatpush.msra.mxu0 0.0
      %373 = vmatpush.msra.mxu0 0.0
      %374 = vmatpush.msra.mxu0 0.0
      %375 = vmatpush.msra.mxu0 0.0
      %376 = vmatpush.msra.mxu0 0.0
      %377 = vmatpush.msra.mxu0 0.0
      %378 = vmatpush.msra.mxu0 0.0
      %379 = vmatpush.msra.mxu0 0.0
      %380 = vmatpush.msra.mxu0 0.0
      %381 = vmatpush.msra.mxu0 0.0
      %382 = vmatpush.msra.mxu0 0.0
      %383 = vmatpush.msra.mxu0 %v205
      %384 = vmatpush.msra.mxu0 %v201
      %385 = vmatmul.f32.gmra.mxu0 %v295
      %v386 = vpop.f32.mrf.mxu0
      %v387 = vadd.f32 0.0, %v386
      %388 = vmatmul.f32.gmra.mxu0 %v298
      %v389 = vpop.f32.mrf.mxu0
      %v390 = vadd.f32 0.0, %v389
      %391 = vdwg.mxu0
      %392 = vrot.lane.b32.xlu0 %v318, 96
      %v393 = vpop.permute.xlu0 %392
      %394 = vrot.lane.b32.xlu0 %v321, 96
      %v395 = vpop.permute.xlu0 %394
      %396 = vrot.lane.b32.xlu0 %v341, 96
      %v397 = vpop.permute.xlu0 %396
      %398 = vrot.lane.b32.xlu0 %v344, 96
      %v399 = vpop.permute.xlu0 %398
      %400 = vrot.lane.b32.xlu0 %v364, 96
      %v401 = vpop.permute.xlu0 %400
      %402 = vrot.lane.b32.xlu0 %v367, 96
      %v403 = vpop.permute.xlu0 %402
      %404 = vrot.lane.b32.xlu0 %v387, 96
      %v405 = vpop.permute.xlu0 %404
      %406 = vrot.lane.b32.xlu0 %v390, 96
      %v407 = vpop.permute.xlu0 %406
      %vm408 = vcmp.lt.s32.totalorder %v207, 96
      %v409 = vsel %vm408, %v401, %v405
      %v410 = vsel %vm408, %v403, %v407
      %v411 = vsel %vm408, %v397, %v401
      %v412 = vsel %vm408, %v399, %v403
      %v413 = vsel %vm408, %v393, %v397
      %v414 = vsel %vm408, %v395, %v399
      %v415 = vsel %vm408, %v405, %v393
      %v416 = vsel %vm408, %v407, %v395
      %417 = vrot.lane.b32.xlu0 %v318, 32
      %v418 = vpop.permute.xlu0 %417
      %419 = vrot.lane.b32.xlu0 %v321, 32
      %v420 = vpop.permute.xlu0 %419
      %421 = vrot.lane.b32.xlu0 %v341, 32
      %v422 = vpop.permute.xlu0 %421
      %423 = vrot.lane.b32.xlu0 %v344, 32
      %v424 = vpop.permute.xlu0 %423
      %425 = vrot.lane.b32.xlu0 %v364, 32
      %v426 = vpop.permute.xlu0 %425
      %427 = vrot.lane.b32.xlu0 %v367, 32
      %v428 = vpop.permute.xlu0 %427
      %429 = vrot.lane.b32.xlu0 %v387, 32
      %v430 = vpop.permute.xlu0 %429
      %431 = vrot.lane.b32.xlu0 %v390, 32
      %v432 = vpop.permute.xlu0 %431
      %v433 = vsel %vm267, %v426, %v430
      %v434 = vsel %vm267, %v428, %v432
      %v435 = vsel %vm267, %v422, %v426
      %v436 = vsel %vm267, %v424, %v428
      %v437 = vsel %vm267, %v418, %v422
      %v438 = vsel %vm267, %v420, %v424
      %v439 = vsel %vm267, %v430, %v418
      %v440 = vsel %vm267, %v432, %v420
      %v441 = vsel %vm267, 1, 0
      %v442 = vsel %vm268, 1, 0
      %v443 = vsel %vm269, 1, 0
      %v444 = vsel %vm270, 1, 0
      %vm445 = vcmp.eq.s32.totalorder %v441, 1
      %vm446 = vcmp.eq.s32.totalorder %v442, 1
      %vm447 = vcmp.eq.s32.totalorder %v443, 1
      %vm448 = vcmp.eq.s32.totalorder %v444, 1
      %v449 = vsel %vm445, %v413, %v439
      %v450 = vsel %vm446, %v411, %v437
      %v451 = vsel %vm447, %v409, %v435
      %v452 = vsel %vm448, %v415, %v433
      %v453 = vsel %vm445, %v414, %v440
      %v454 = vsel %vm446, %v412, %v438
      %v455 = vsel %vm447, %v410, %v436
      %v456 = vsel %vm448, %v416, %v434
      %v457 = vsel %vm279, 1, 0
      %v458 = vsel %vm280, 1, 0
      %v459 = vsel %vm281, 1, 0
      %v460 = vsel %vm282, 1, 0
      %vm461 = vcmp.eq.s32.totalorder %v457, 1
      %vm462 = vcmp.eq.s32.totalorder %v458, 1
      %vm463 = vcmp.eq.s32.totalorder %v459, 1
      %vm464 = vcmp.eq.s32.totalorder %v460, 1
      %v465 = vsel %vm461, %v439, %v413
      %v466 = vsel %vm462, %v437, %v411
      %v467 = vsel %vm463, %v435, %v409
      %v468 = vsel %vm464, %v433, %v415
      %v469 = vsel %vm461, %v440, %v414
      %v470 = vsel %vm462, %v438, %v412
      %v471 = vsel %vm463, %v436, %v410
      %v472 = vsel %vm464, %v434, %v416
      %473 = vrot.lane.b32.xlu0 %v449, 127
      %v474 = vpop.permute.xlu0 %473
      %475 = vrot.lane.b32.xlu0 %v453, 127
      %v476 = vpop.permute.xlu0 %475
      %477 = vrot.lane.b32.xlu0 %v450, 127
      %v478 = vpop.permute.xlu0 %477
      %479 = vrot.lane.b32.xlu0 %v454, 127
      %v480 = vpop.permute.xlu0 %479
      %481 = vrot.lane.b32.xlu0 %v451, 127
      %v482 = vpop.permute.xlu0 %481
      %483 = vrot.lane.b32.xlu0 %v455, 127
      %v484 = vpop.permute.xlu0 %483
      %485 = vrot.lane.b32.xlu0 %v452, 127
      %v486 = vpop.permute.xlu0 %485
      %487 = vrot.lane.b32.xlu0 %v456, 127
      %v488 = vpop.permute.xlu0 %487
      %vm489 = vcmp.lt.s32.totalorder %v207, 127
      %v490 = vsel %vm489, %v482, %v486
      %v491 = vsel %vm489, %v484, %v488
      %v492 = vsel %vm489, %v478, %v482
      %v493 = vsel %vm489, %v480, %v484
      %v494 = vsel %vm489, %v474, %v478
      %v495 = vsel %vm489, %v476, %v480
      %v496 = vsel %vm489, %v486, %v474
      %v497 = vsel %vm489, %v488, %v476
      %498 = vrot.lane.b32.xlu0 %v449, 1
      %v499 = vpop.permute.xlu0 %498
      %500 = vrot.lane.b32.xlu0 %v453, 1
      %v501 = vpop.permute.xlu0 %500
      %502 = vrot.lane.b32.xlu0 %v450, 1
      %v503 = vpop.permute.xlu0 %502
      %504 = vrot.lane.b32.xlu0 %v454, 1
      %v505 = vpop.permute.xlu0 %504
      %506 = vrot.lane.b32.xlu0 %v451, 1
      %v507 = vpop.permute.xlu0 %506
      %508 = vrot.lane.b32.xlu0 %v455, 1
      %v509 = vpop.permute.xlu0 %508
      %510 = vrot.lane.b32.xlu0 %v452, 1
      %v511 = vpop.permute.xlu0 %510
      %512 = vrot.lane.b32.xlu0 %v456, 1
      %v513 = vpop.permute.xlu0 %512
      %vm514 = vcmp.lt.s32.totalorder %v207, 1
      %v515 = vsel %vm514, %v507, %v511
      %v516 = vsel %vm514, %v509, %v513
      %v517 = vsel %vm514, %v503, %v507
      %v518 = vsel %vm514, %v505, %v509
      %v519 = vsel %vm514, %v499, %v503
      %v520 = vsel %vm514, %v501, %v505
      %v521 = vsel %vm514, %v511, %v499
      %v522 = vsel %vm514, %v513, %v501
      %v523 = vsel %vm259, 1, 0
      %v524 = vsel %vm260, 1, 0
      %v525 = vsel %vm261, 1, 0
      %v526 = vsel %vm262, 1, 0
      %vm527 = vcmp.eq.s32.totalorder %v523, 1
      %vm528 = vcmp.eq.s32.totalorder %v524, 1
      %vm529 = vcmp.eq.s32.totalorder %v525, 1
      %vm530 = vcmp.eq.s32.totalorder %v526, 1
      %v531 = vsel %vm527, %v494, %v521
      %v532 = vsel %vm528, %v492, %v519
      %v533 = vsel %vm529, %v490, %v517
      %v534 = vsel %vm530, %v496, %v515
      %v535 = vsel %vm527, %v495, %v522
      %v536 = vsel %vm528, %v493, %v520
      %v537 = vsel %vm529, %v491, %v518
      %v538 = vsel %vm530, %v497, %v516
      %v539 = vsel %vm263, 1, 0
      %v540 = vsel %vm264, 1, 0
      %v541 = vsel %vm265, 1, 0
      %v542 = vsel %vm266, 1, 0
      %vm543 = vcmp.eq.s32.totalorder %v539, 1
      %vm544 = vcmp.eq.s32.totalorder %v540, 1
      %vm545 = vcmp.eq.s32.totalorder %v541, 1
      %vm546 = vcmp.eq.s32.totalorder %v542, 1
      %v547 = vsel %vm543, %v521, %v494
      %v548 = vsel %vm544, %v519, %v492
      %v549 = vsel %vm545, %v517, %v490
      %v550 = vsel %vm546, %v515, %v496
      %v551 = vsel %vm543, %v522, %v495
      %v552 = vsel %vm544, %v520, %v493
      %v553 = vsel %vm545, %v518, %v491
      %v554 = vsel %vm546, %v516, %v497
      %556 = vset.pattern.permute.xlu0 0
      %557 = vperm.xlu0 %556, %v287
      %v558 = vpop.permute.xlu0 %557
      %561 = vset.pattern.permute.xlu0 0
      %562 = vperm.xlu0 %561, %v288
      %v563 = vpop.permute.xlu0 %562
      %v565 = vmul.f32 %v531, %v558
      %v566 = vmul.f32 %v532, %v558
      %v567 = vmul.f32 %v533, %v558
      %v568 = vmul.f32 %v534, %v558
      %v569 = vmul.f32 %v535, %v563
      %v570 = vmul.f32 %v536, %v563
      %v571 = vmul.f32 %v537, %v563
      %v572 = vmul.f32 %v538, %v563
      %573 = vset.pattern.permute.xlu0 1
      %574 = vperm.xlu0 %573, %v287
      %v575 = vpop.permute.xlu0 %574
      %577 = vset.pattern.permute.xlu0 1
      %578 = vperm.xlu0 %577, %v288
      %v579 = vpop.permute.xlu0 %578
      %v581 = vmul.f32 %v449, %v575
      %v582 = vmul.f32 %v450, %v575
      %v583 = vmul.f32 %v451, %v575
      %v584 = vmul.f32 %v452, %v575
      %v585 = vmul.f32 %v453, %v579
      %v586 = vmul.f32 %v454, %v579
      %v587 = vmul.f32 %v455, %v579
      %v588 = vmul.f32 %v456, %v579
      %v589 = vadd.f32 %v565, %v581
      %v590 = vadd.f32 %v566, %v582
      %v591 = vadd.f32 %v567, %v583
      %v592 = vadd.f32 %v568, %v584
      %v593 = vadd.f32 %v569, %v585
      %v594 = vadd.f32 %v570, %v586
      %v595 = vadd.f32 %v571, %v587
      %v596 = vadd.f32 %v572, %v588
      %597 = vset.pattern.permute.xlu0 2
      %598 = vperm.xlu0 %597, %v287
      %v599 = vpop.permute.xlu0 %598
      %601 = vset.pattern.permute.xlu0 2
      %602 = vperm.xlu0 %601, %v288
      %v603 = vpop.permute.xlu0 %602
      %v605 = vmul.f32 %v547, %v599
      %v606 = vmul.f32 %v548, %v599
      %v607 = vmul.f32 %v549, %v599
      %v608 = vmul.f32 %v550, %v599
      %v609 = vmul.f32 %v551, %v603
      %v610 = vmul.f32 %v552, %v603
      %v611 = vmul.f32 %v553, %v603
      %v612 = vmul.f32 %v554, %v603
      %v613 = vadd.f32 %v589, %v605
      %v614 = vadd.f32 %v590, %v606
      %v615 = vadd.f32 %v591, %v607
      %v616 = vadd.f32 %v592, %v608
      %v617 = vadd.f32 %v593, %v609
      %v618 = vadd.f32 %v594, %v610
      %v619 = vadd.f32 %v595, %v611
      %v620 = vadd.f32 %v596, %v612
      %621 = vrot.lane.b32.xlu0 %v318, 127
      %v622 = vpop.permute.xlu0 %621
      %623 = vrot.lane.b32.xlu0 %v321, 127
      %v624 = vpop.permute.xlu0 %623
      %625 = vrot.lane.b32.xlu0 %v341, 127
      %v626 = vpop.permute.xlu0 %625
      %627 = vrot.lane.b32.xlu0 %v344, 127
      %v628 = vpop.permute.xlu0 %627
      %629 = vrot.lane.b32.xlu0 %v364, 127
      %v630 = vpop.permute.xlu0 %629
      %631 = vrot.lane.b32.xlu0 %v367, 127
      %v632 = vpop.permute.xlu0 %631
      %633 = vrot.lane.b32.xlu0 %v387, 127
      %v634 = vpop.permute.xlu0 %633
      %635 = vrot.lane.b32.xlu0 %v390, 127
      %v636 = vpop.permute.xlu0 %635
      %v637 = vsel %vm489, %v630, %v634
      %v638 = vsel %vm489, %v632, %v636
      %v639 = vsel %vm489, %v626, %v630
      %v640 = vsel %vm489, %v628, %v632
      %v641 = vsel %vm489, %v622, %v626
      %v642 = vsel %vm489, %v624, %v628
      %v643 = vsel %vm489, %v634, %v622
      %v644 = vsel %vm489, %v636, %v624
      %645 = vrot.lane.b32.xlu0 %v318, 1
      %v646 = vpop.permute.xlu0 %645
      %647 = vrot.lane.b32.xlu0 %v321, 1
      %v648 = vpop.permute.xlu0 %647
      %649 = vrot.lane.b32.xlu0 %v341, 1
      %v650 = vpop.permute.xlu0 %649
      %651 = vrot.lane.b32.xlu0 %v344, 1
      %v652 = vpop.permute.xlu0 %651
      %653 = vrot.lane.b32.xlu0 %v364, 1
      %v654 = vpop.permute.xlu0 %653
      %655 = vrot.lane.b32.xlu0 %v367, 1
      %v656 = vpop.permute.xlu0 %655
      %657 = vrot.lane.b32.xlu0 %v387, 1
      %v658 = vpop.permute.xlu0 %657
      %659 = vrot.lane.b32.xlu0 %v390, 1
      %v660 = vpop.permute.xlu0 %659
      %v661 = vsel %vm514, %v654, %v658
      %v662 = vsel %vm514, %v656, %v660
      %v663 = vsel %vm514, %v650, %v654
      %v664 = vsel %vm514, %v652, %v656
      %v665 = vsel %vm514, %v646, %v650
      %v666 = vsel %vm514, %v648, %v652
      %v667 = vsel %vm514, %v658, %v646
      %v668 = vsel %vm514, %v660, %v648
      %v669 = vsel %vm527, %v641, %v667
      %v670 = vsel %vm528, %v639, %v665
      %v671 = vsel %vm529, %v637, %v663
      %v672 = vsel %vm530, %v643, %v661
      %v673 = vsel %vm527, %v642, %v668
      %v674 = vsel %vm528, %v640, %v666
      %v675 = vsel %vm529, %v638, %v664
      %v676 = vsel %vm530, %v644, %v662
      %v677 = vsel %vm543, %v667, %v641
      %v678 = vsel %vm544, %v665, %v639
      %v679 = vsel %vm545, %v663, %v637
      %v680 = vsel %vm546, %v661, %v643
      %v681 = vsel %vm543, %v668, %v642
      %v682 = vsel %vm544, %v666, %v640
      %v683 = vsel %vm545, %v664, %v638
      %v684 = vsel %vm546, %v662, %v644
      %685 = vset.pattern.permute.xlu0 3
      %686 = vperm.xlu0 %685, %v287
      %v687 = vpop.permute.xlu0 %686
      %689 = vset.pattern.permute.xlu0 3
      %690 = vperm.xlu0 %689, %v288
      %v691 = vpop.permute.xlu0 %690
      %v693 = vmul.f32 %v669, %v687
      %v694 = vmul.f32 %v670, %v687
      %v695 = vmul.f32 %v671, %v687
      %v696 = vmul.f32 %v672, %v687
      %v697 = vmul.f32 %v673, %v691
      %v698 = vmul.f32 %v674, %v691
      %v699 = vmul.f32 %v675, %v691
      %v700 = vmul.f32 %v676, %v691
      %v701 = vadd.f32 %v613, %v693
      %v702 = vadd.f32 %v614, %v694
      %v703 = vadd.f32 %v615, %v695
      %v704 = vadd.f32 %v616, %v696
      %v705 = vadd.f32 %v617, %v697
      %v706 = vadd.f32 %v618, %v698
      %v707 = vadd.f32 %v619, %v699
      %v708 = vadd.f32 %v620, %v700
      %709 = vset.pattern.permute.xlu0 4
      %710 = vperm.xlu0 %709, %v287
      %v711 = vpop.permute.xlu0 %710
      %713 = vset.pattern.permute.xlu0 4
      %714 = vperm.xlu0 %713, %v288
      %v715 = vpop.permute.xlu0 %714
      %v717 = vmul.f32 %v318, %v711
      %v718 = vmul.f32 %v341, %v711
      %v719 = vmul.f32 %v364, %v711
      %v720 = vmul.f32 %v387, %v711
      %v721 = vmul.f32 %v321, %v715
      %v722 = vmul.f32 %v344, %v715
      %v723 = vmul.f32 %v367, %v715
      %v724 = vmul.f32 %v390, %v715
      %v725 = vadd.f32 %v701, %v717
      %v726 = vadd.f32 %v702, %v718
      %v727 = vadd.f32 %v703, %v719
      %v728 = vadd.f32 %v704, %v720
      %v729 = vadd.f32 %v705, %v721
      %v730 = vadd.f32 %v706, %v722
      %v731 = vadd.f32 %v707, %v723
      %v732 = vadd.f32 %v708, %v724
      %733 = vset.pattern.permute.xlu0 5
      %734 = vperm.xlu0 %733, %v287
      %v735 = vpop.permute.xlu0 %734
      %737 = vset.pattern.permute.xlu0 5
      %738 = vperm.xlu0 %737, %v288
      %v739 = vpop.permute.xlu0 %738
      %v741 = vmul.f32 %v677, %v735
      %v742 = vmul.f32 %v678, %v735
      %v743 = vmul.f32 %v679, %v735
      %v744 = vmul.f32 %v680, %v735
      %v745 = vmul.f32 %v681, %v739
      %v746 = vmul.f32 %v682, %v739
      %v747 = vmul.f32 %v683, %v739
      %v748 = vmul.f32 %v684, %v739
      %v749 = vadd.f32 %v725, %v741
      %v750 = vadd.f32 %v726, %v742
      %v751 = vadd.f32 %v727, %v743
      %v752 = vadd.f32 %v728, %v744
      %v753 = vadd.f32 %v729, %v745
      %v754 = vadd.f32 %v730, %v746
      %v755 = vadd.f32 %v731, %v747
      %v756 = vadd.f32 %v732, %v748
      %757 = vrot.lane.b32.xlu0 %v465, 127
      %v758 = vpop.permute.xlu0 %757
      %759 = vrot.lane.b32.xlu0 %v469, 127
      %v760 = vpop.permute.xlu0 %759
      %761 = vrot.lane.b32.xlu0 %v466, 127
      %v762 = vpop.permute.xlu0 %761
      %763 = vrot.lane.b32.xlu0 %v470, 127
      %v764 = vpop.permute.xlu0 %763
      %765 = vrot.lane.b32.xlu0 %v467, 127
      %v766 = vpop.permute.xlu0 %765
      %767 = vrot.lane.b32.xlu0 %v471, 127
      %v768 = vpop.permute.xlu0 %767
      %769 = vrot.lane.b32.xlu0 %v468, 127
      %v770 = vpop.permute.xlu0 %769
      %771 = vrot.lane.b32.xlu0 %v472, 127
      %v772 = vpop.permute.xlu0 %771
      %v773 = vsel %vm489, %v766, %v770
      %v774 = vsel %vm489, %v768, %v772
      %v775 = vsel %vm489, %v762, %v766
      %v776 = vsel %vm489, %v764, %v768
      %v777 = vsel %vm489, %v758, %v762
      %v778 = vsel %vm489, %v760, %v764
      %v779 = vsel %vm489, %v770, %v758
      %v780 = vsel %vm489, %v772, %v760
      %781 = vrot.lane.b32.xlu0 %v465, 1
      %v782 = vpop.permute.xlu0 %781
      %783 = vrot.lane.b32.xlu0 %v469, 1
      %v784 = vpop.permute.xlu0 %783
      %785 = vrot.lane.b32.xlu0 %v466, 1
      %v786 = vpop.permute.xlu0 %785
      %787 = vrot.lane.b32.xlu0 %v470, 1
      %v788 = vpop.permute.xlu0 %787
      %789 = vrot.lane.b32.xlu0 %v467, 1
      %v790 = vpop.permute.xlu0 %789
      %791 = vrot.lane.b32.xlu0 %v471, 1
      %v792 = vpop.permute.xlu0 %791
      %793 = vrot.lane.b32.xlu0 %v468, 1
      %v794 = vpop.permute.xlu0 %793
      %795 = vrot.lane.b32.xlu0 %v472, 1
      %v796 = vpop.permute.xlu0 %795
      %v797 = vsel %vm514, %v790, %v794
      %v798 = vsel %vm514, %v792, %v796
      %v799 = vsel %vm514, %v786, %v790
      %v800 = vsel %vm514, %v788, %v792
      %v801 = vsel %vm514, %v782, %v786
      %v802 = vsel %vm514, %v784, %v788
      %v803 = vsel %vm514, %v794, %v782
      %v804 = vsel %vm514, %v796, %v784
      %v805 = vsel %vm527, %v777, %v803
      %v806 = vsel %vm528, %v775, %v801
      %v807 = vsel %vm529, %v773, %v799
      %v808 = vsel %vm530, %v779, %v797
      %v809 = vsel %vm527, %v778, %v804
      %v810 = vsel %vm528, %v776, %v802
      %v811 = vsel %vm529, %v774, %v800
      %v812 = vsel %vm530, %v780, %v798
      %v813 = vsel %vm543, %v803, %v777
      %v814 = vsel %vm544, %v801, %v775
      %v815 = vsel %vm545, %v799, %v773
      %v816 = vsel %vm546, %v797, %v779
      %v817 = vsel %vm543, %v804, %v778
      %v818 = vsel %vm544, %v802, %v776
      %v819 = vsel %vm545, %v800, %v774
      %v820 = vsel %vm546, %v798, %v780
      %821 = vset.pattern.permute.xlu0 6
      %822 = vperm.xlu0 %821, %v287
      %v823 = vpop.permute.xlu0 %822
      %825 = vset.pattern.permute.xlu0 6
      %826 = vperm.xlu0 %825, %v288
      %v827 = vpop.permute.xlu0 %826
      %v829 = vmul.f32 %v805, %v823
      %v830 = vmul.f32 %v806, %v823
      %v831 = vmul.f32 %v807, %v823
      %v832 = vmul.f32 %v808, %v823
      %v833 = vmul.f32 %v809, %v827
      %v834 = vmul.f32 %v810, %v827
      %v835 = vmul.f32 %v811, %v827
      %v836 = vmul.f32 %v812, %v827
      %v837 = vadd.f32 %v749, %v829
      %v838 = vadd.f32 %v750, %v830
      %v839 = vadd.f32 %v751, %v831
      %v840 = vadd.f32 %v752, %v832
      %v841 = vadd.f32 %v753, %v833
      %v842 = vadd.f32 %v754, %v834
      %v843 = vadd.f32 %v755, %v835
      %v844 = vadd.f32 %v756, %v836
      %845 = vset.pattern.permute.xlu0 7
      %846 = vperm.xlu0 %845, %v287
      %v847 = vpop.permute.xlu0 %846
      %849 = vset.pattern.permute.xlu0 7
      %850 = vperm.xlu0 %849, %v288
      %v851 = vpop.permute.xlu0 %850
      %v853 = vmul.f32 %v465, %v847
      %v854 = vmul.f32 %v466, %v847
      %v855 = vmul.f32 %v467, %v847
      %v856 = vmul.f32 %v468, %v847
      %v857 = vmul.f32 %v469, %v851
      %v858 = vmul.f32 %v470, %v851
      %v859 = vmul.f32 %v471, %v851
      %v860 = vmul.f32 %v472, %v851
      %v861 = vadd.f32 %v837, %v853
      %v862 = vadd.f32 %v838, %v854
      %v863 = vadd.f32 %v839, %v855
      %v864 = vadd.f32 %v840, %v856
      %v865 = vadd.f32 %v841, %v857
      %v866 = vadd.f32 %v842, %v858
      %v867 = vadd.f32 %v843, %v859
      %v868 = vadd.f32 %v844, %v860
      %869 = vset.pattern.permute.xlu0 8
      %870 = vperm.xlu0 %869, %v287
      %v871 = vpop.permute.xlu0 %870
      %873 = vset.pattern.permute.xlu0 8
      %874 = vperm.xlu0 %873, %v288
      %v875 = vpop.permute.xlu0 %874
      %v877 = vmul.f32 %v813, %v871
      %v878 = vmul.f32 %v814, %v871
      %v879 = vmul.f32 %v815, %v871
      %v880 = vmul.f32 %v816, %v871
      %v881 = vmul.f32 %v817, %v875
      %v882 = vmul.f32 %v818, %v875
      %v883 = vmul.f32 %v819, %v875
      %v884 = vmul.f32 %v820, %v875
      %v885 = vadd.f32 %v861, %v877
      %v886 = vadd.f32 %v862, %v878
      %v887 = vadd.f32 %v863, %v879
      %v888 = vadd.f32 %v864, %v880
      %v889 = vadd.f32 %v865, %v881
      %v890 = vadd.f32 %v866, %v882
      %v891 = vadd.f32 %v867, %v883
      %v892 = vadd.f32 %v868, %v884
      %894 = vset.pattern.permute.xlu0 0
      %895 = vperm.xlu0 %894, %v291
      %v896 = vpop.permute.xlu0 %895
      %899 = vset.pattern.permute.xlu0 0
      %900 = vperm.xlu0 %899, %v292
      %v901 = vpop.permute.xlu0 %900
      %v903 = vadd.f32 %v885, %v896
      %v904 = vadd.f32 %v886, %v896
      %v905 = vadd.f32 %v887, %v896
      %v906 = vadd.f32 %v888, %v896
      %v907 = vadd.f32 %v889, %v901
      %v908 = vadd.f32 %v890, %v901
      %v909 = vadd.f32 %v891, %v901
      %v910 = vadd.f32 %v892, %v901
      %v911 = vmax.f32 %v903, 0.0
      %v912 = vmax.f32 %v904, 0.0
      %v913 = vmax.f32 %v905, 0.0
      %v914 = vmax.f32 %v906, 0.0
      %v915 = vmax.f32 %v907, 0.0
      %v916 = vmax.f32 %v908, 0.0
      %v917 = vmax.f32 %v909, 0.0
      %v918 = vmax.f32 %v910, 0.0
      %v920 = vsel %vm293, %v285, 0
      %v923 = vsel %vm293, %v286, 0
      %925 = vmatpush.msra.mxu0 0.0
      %926 = vmatpush.msra.mxu0 0.0
      %927 = vmatpush.msra.mxu0 0.0
      %928 = vmatpush.msra.mxu0 0.0
      %929 = vmatpush.msra.mxu0 0.0
      %930 = vmatpush.msra.mxu0 0.0
      %931 = vmatpush.msra.mxu0 0.0
      %932 = vmatpush.msra.mxu0 0.0
      %933 = vmatpush.msra.mxu0 0.0
      %934 = vmatpush.msra.mxu0 0.0
      %935 = vmatpush.msra.mxu0 0.0
      %936 = vmatpush.msra.mxu0 0.0
      %937 = vmatpush.msra.mxu0 0.0
      %938 = vmatpush.msra.mxu0 0.0
      %939 = vmatpush.msra.mxu0 %v915
      %940 = vmatpush.msra.mxu0 %v911
      %941 = vmatmul.f32.gmra.mxu0 %v920
      %v942 = vpop.f32.mrf.mxu0
      %v943 = vadd.f32 0.0, %v942
      %944 = vmatmul.f32.gmra.mxu0 %v923
      %v945 = vpop.f32.mrf.mxu0
      %v946 = vadd.f32 0.0, %v945
      %947 = vdwg.mxu0
      %948 = vmatpush.msra.mxu0 0.0
      %949 = vmatpush.msra.mxu0 0.0
      %950 = vmatpush.msra.mxu0 0.0
      %951 = vmatpush.msra.mxu0 0.0
      %952 = vmatpush.msra.mxu0 0.0
      %953 = vmatpush.msra.mxu0 0.0
      %954 = vmatpush.msra.mxu0 0.0
      %955 = vmatpush.msra.mxu0 0.0
      %956 = vmatpush.msra.mxu0 0.0
      %957 = vmatpush.msra.mxu0 0.0
      %958 = vmatpush.msra.mxu0 0.0
      %959 = vmatpush.msra.mxu0 0.0
      %960 = vmatpush.msra.mxu0 0.0
      %961 = vmatpush.msra.mxu0 0.0
      %962 = vmatpush.msra.mxu0 %v916
      %963 = vmatpush.msra.mxu0 %v912
      %964 = vmatmul.f32.gmra.mxu0 %v920
      %v965 = vpop.f32.mrf.mxu0
      %v966 = vadd.f32 0.0, %v965
      %967 = vmatmul.f32.gmra.mxu0 %v923
      %v968 = vpop.f32.mrf.mxu0
      %v969 = vadd.f32 0.0, %v968
      %970 = vdwg.mxu0
      %971 = vmatpush.msra.mxu0 0.0
      %972 = vmatpush.msra.mxu0 0.0
      %973 = vmatpush.msra.mxu0 0.0
      %974 = vmatpush.msra.mxu0 0.0
      %975 = vmatpush.msra.mxu0 0.0
      %976 = vmatpush.msra.mxu0 0.0
      %977 = vmatpush.msra.mxu0 0.0
      %978 = vmatpush.msra.mxu0 0.0
      %979 = vmatpush.msra.mxu0 0.0
      %980 = vmatpush.msra.mxu0 0.0
      %981 = vmatpush.msra.mxu0 0.0
      %982 = vmatpush.msra.mxu0 0.0
      %983 = vmatpush.msra.mxu0 0.0
      %984 = vmatpush.msra.mxu0 0.0
      %985 = vmatpush.msra.mxu0 %v917
      %986 = vmatpush.msra.mxu0 %v913
      %987 = vmatmul.f32.gmra.mxu0 %v920
      %v988 = vpop.f32.mrf.mxu0
      %v989 = vadd.f32 0.0, %v988
      %990 = vmatmul.f32.gmra.mxu0 %v923
      %v991 = vpop.f32.mrf.mxu0
      %v992 = vadd.f32 0.0, %v991
      %993 = vdwg.mxu0
      %994 = vmatpush.msra.mxu0 0.0
      %995 = vmatpush.msra.mxu0 0.0
      %996 = vmatpush.msra.mxu0 0.0
      %997 = vmatpush.msra.mxu0 0.0
      %998 = vmatpush.msra.mxu0 0.0
      %999 = vmatpush.msra.mxu0 0.0
      %1000 = vmatpush.msra.mxu0 0.0
      %1001 = vmatpush.msra.mxu0 0.0
      %1002 = vmatpush.msra.mxu0 0.0
      %1003 = vmatpush.msra.mxu0 0.0
      %1004 = vmatpush.msra.mxu0 0.0
      %1005 = vmatpush.msra.mxu0 0.0
      %1006 = vmatpush.msra.mxu0 0.0
      %1007 = vmatpush.msra.mxu0 0.0
      %1008 = vmatpush.msra.mxu0 %v918
      %1009 = vmatpush.msra.mxu0 %v914
      %1010 = vmatmul.f32.gmra.mxu0 %v920
      %v1011 = vpop.f32.mrf.mxu0
      %v1012 = vadd.f32 0.0, %v1011
      %1013 = vmatmul.f32.gmra.mxu0 %v923
      %v1014 = vpop.f32.mrf.mxu0
      %v1015 = vadd.f32 0.0, %v1014
      %1016 = vdwg.mxu0
      %1017 = vrot.lane.b32.xlu0 %v943, 96
      %v1018 = vpop.permute.xlu0 %1017
      %1019 = vrot.lane.b32.xlu0 %v946, 96
      %v1020 = vpop.permute.xlu0 %1019
      %1021 = vrot.lane.b32.xlu0 %v966, 96
      %v1022 = vpop.permute.xlu0 %1021
      %1023 = vrot.lane.b32.xlu0 %v969, 96
      %v1024 = vpop.permute.xlu0 %1023
      %1025 = vrot.lane.b32.xlu0 %v989, 96
      %v1026 = vpop.permute.xlu0 %1025
      %1027 = vrot.lane.b32.xlu0 %v992, 96
      %v1028 = vpop.permute.xlu0 %1027
      %1029 = vrot.lane.b32.xlu0 %v1012, 96
      %v1030 = vpop.permute.xlu0 %1029
      %1031 = vrot.lane.b32.xlu0 %v1015, 96
      %v1032 = vpop.permute.xlu0 %1031
      %v1033 = vsel %vm408, %v1026, %v1030
      %v1034 = vsel %vm408, %v1028, %v1032
      %v1035 = vsel %vm408, %v1022, %v1026
      %v1036 = vsel %vm408, %v1024, %v1028
      %v1037 = vsel %vm408, %v1018, %v1022
      %v1038 = vsel %vm408, %v1020, %v1024
      %v1039 = vsel %vm408, %v1030, %v1018
      %v1040 = vsel %vm408, %v1032, %v1020
      %1041 = vrot.lane.b32.xlu0 %v943, 32
      %v1042 = vpop.permute.xlu0 %1041
      %1043 = vrot.lane.b32.xlu0 %v946, 32
      %v1044 = vpop.permute.xlu0 %1043
      %1045 = vrot.lane.b32.xlu0 %v966, 32
      %v1046 = vpop.permute.xlu0 %1045
      %1047 = vrot.lane.b32.xlu0 %v969, 32
      %v1048 = vpop.permute.xlu0 %1047
      %1049 = vrot.lane.b32.xlu0 %v989, 32
      %v1050 = vpop.permute.xlu0 %1049
      %1051 = vrot.lane.b32.xlu0 %v992, 32
      %v1052 = vpop.permute.xlu0 %1051
      %1053 = vrot.lane.b32.xlu0 %v1012, 32
      %v1054 = vpop.permute.xlu0 %1053
      %1055 = vrot.lane.b32.xlu0 %v1015, 32
      %v1056 = vpop.permute.xlu0 %1055
      %v1057 = vsel %vm267, %v1050, %v1054
      %v1058 = vsel %vm267, %v1052, %v1056
      %v1059 = vsel %vm267, %v1046, %v1050
      %v1060 = vsel %vm267, %v1048, %v1052
      %v1061 = vsel %vm267, %v1042, %v1046
      %v1062 = vsel %vm267, %v1044, %v1048
      %v1063 = vsel %vm267, %v1054, %v1042
      %v1064 = vsel %vm267, %v1056, %v1044
      %v1065 = vsel %vm445, %v1037, %v1063
      %v1066 = vsel %vm446, %v1035, %v1061
      %v1067 = vsel %vm447, %v1033, %v1059
      %v1068 = vsel %vm448, %v1039, %v1057
      %v1069 = vsel %vm445, %v1038, %v1064
      %v1070 = vsel %vm446, %v1036, %v1062
      %v1071 = vsel %vm447, %v1034, %v1060
      %v1072 = vsel %vm448, %v1040, %v1058
      %v1073 = vsel %vm461, %v1063, %v1037
      %v1074 = vsel %vm462, %v1061, %v1035
      %v1075 = vsel %vm463, %v1059, %v1033
      %v1076 = vsel %vm464, %v1057, %v1039
      %v1077 = vsel %vm461, %v1064, %v1038
      %v1078 = vsel %vm462, %v1062, %v1036
      %v1079 = vsel %vm463, %v1060, %v1034
      %v1080 = vsel %vm464, %v1058, %v1040
      %1081 = vrot.lane.b32.xlu0 %v1065, 127
      %v1082 = vpop.permute.xlu0 %1081
      %1083 = vrot.lane.b32.xlu0 %v1069, 127
      %v1084 = vpop.permute.xlu0 %1083
      %1085 = vrot.lane.b32.xlu0 %v1066, 127
      %v1086 = vpop.permute.xlu0 %1085
      %1087 = vrot.lane.b32.xlu0 %v1070, 127
      %v1088 = vpop.permute.xlu0 %1087
      %1089 = vrot.lane.b32.xlu0 %v1067, 127
      %v1090 = vpop.permute.xlu0 %1089
      %1091 = vrot.lane.b32.xlu0 %v1071, 127
      %v1092 = vpop.permute.xlu0 %1091
      %1093 = vrot.lane.b32.xlu0 %v1068, 127
      %v1094 = vpop.permute.xlu0 %1093
      %1095 = vrot.lane.b32.xlu0 %v1072, 127
      %v1096 = vpop.permute.xlu0 %1095
      %v1097 = vsel %vm489, %v1090, %v1094
      %v1098 = vsel %vm489, %v1092, %v1096
      %v1099 = vsel %vm489, %v1086, %v1090
      %v1100 = vsel %vm489, %v1088, %v1092
      %v1101 = vsel %vm489, %v1082, %v1086
      %v1102 = vsel %vm489, %v1084, %v1088
      %v1103 = vsel %vm489, %v1094, %v1082
      %v1104 = vsel %vm489, %v1096, %v1084
      %1105 = vrot.lane.b32.xlu0 %v1065, 1
      %v1106 = vpop.permute.xlu0 %1105
      %1107 = vrot.lane.b32.xlu0 %v1069, 1
      %v1108 = vpop.permute.xlu0 %1107
      %1109 = vrot.lane.b32.xlu0 %v1066, 1
      %v1110 = vpop.permute.xlu0 %1109
      %1111 = vrot.lane.b32.xlu0 %v1070, 1
      %v1112 = vpop.permute.xlu0 %1111
      %1113 = vrot.lane.b32.xlu0 %v1067, 1
      %v1114 = vpop.permute.xlu0 %1113
      %1115 = vrot.lane.b32.xlu0 %v1071, 1
      %v1116 = vpop.permute.xlu0 %1115
      %1117 = vrot.lane.b32.xlu0 %v1068, 1
      %v1118 = vpop.permute.xlu0 %1117
      %1119 = vrot.lane.b32.xlu0 %v1072, 1
      %v1120 = vpop.permute.xlu0 %1119
      %v1121 = vsel %vm514, %v1114, %v1118
      %v1122 = vsel %vm514, %v1116, %v1120
      %v1123 = vsel %vm514, %v1110, %v1114
      %v1124 = vsel %vm514, %v1112, %v1116
      %v1125 = vsel %vm514, %v1106, %v1110
      %v1126 = vsel %vm514, %v1108, %v1112
      %v1127 = vsel %vm514, %v1118, %v1106
      %v1128 = vsel %vm514, %v1120, %v1108
      %v1129 = vsel %vm527, %v1101, %v1127
      %v1130 = vsel %vm528, %v1099, %v1125
      %v1131 = vsel %vm529, %v1097, %v1123
      %v1132 = vsel %vm530, %v1103, %v1121
      %v1133 = vsel %vm527, %v1102, %v1128
      %v1134 = vsel %vm528, %v1100, %v1126
      %v1135 = vsel %vm529, %v1098, %v1124
      %v1136 = vsel %vm530, %v1104, %v1122
      %v1137 = vsel %vm543, %v1127, %v1101
      %v1138 = vsel %vm544, %v1125, %v1099
      %v1139 = vsel %vm545, %v1123, %v1097
      %v1140 = vsel %vm546, %v1121, %v1103
      %v1141 = vsel %vm543, %v1128, %v1102
      %v1142 = vsel %vm544, %v1126, %v1100
      %v1143 = vsel %vm545, %v1124, %v1098
      %v1144 = vsel %vm546, %v1122, %v1104
      %1146 = vset.pattern.permute.xlu0 0
      %1147 = vperm.xlu0 %1146, %v289
      %v1148 = vpop.permute.xlu0 %1147
      %1151 = vset.pattern.permute.xlu0 0
      %1152 = vperm.xlu0 %1151, %v290
      %v1153 = vpop.permute.xlu0 %1152
      %v1155 = vmul.f32 %v1129, %v1148
      %v1156 = vmul.f32 %v1130, %v1148
      %v1157 = vmul.f32 %v1131, %v1148
      %v1158 = vmul.f32 %v1132, %v1148
      %v1159 = vmul.f32 %v1133, %v1153
      %v1160 = vmul.f32 %v1134, %v1153
      %v1161 = vmul.f32 %v1135, %v1153
      %v1162 = vmul.f32 %v1136, %v1153
      %1163 = vset.pattern.permute.xlu0 1
      %1164 = vperm.xlu0 %1163, %v289
      %v1165 = vpop.permute.xlu0 %1164
      %1167 = vset.pattern.permute.xlu0 1
      %1168 = vperm.xlu0 %1167, %v290
      %v1169 = vpop.permute.xlu0 %1168
      %v1171 = vmul.f32 %v1065, %v1165
      %v1172 = vmul.f32 %v1066, %v1165
      %v1173 = vmul.f32 %v1067, %v1165
      %v1174 = vmul.f32 %v1068, %v1165
      %v1175 = vmul.f32 %v1069, %v1169
      %v1176 = vmul.f32 %v1070, %v1169
      %v1177 = vmul.f32 %v1071, %v1169
      %v1178 = vmul.f32 %v1072, %v1169
      %v1179 = vadd.f32 %v1155, %v1171
      %v1180 = vadd.f32 %v1156, %v1172
      %v1181 = vadd.f32 %v1157, %v1173
      %v1182 = vadd.f32 %v1158, %v1174
      %v1183 = vadd.f32 %v1159, %v1175
      %v1184 = vadd.f32 %v1160, %v1176
      %v1185 = vadd.f32 %v1161, %v1177
      %v1186 = vadd.f32 %v1162, %v1178
      %1187 = vset.pattern.permute.xlu0 2
      %1188 = vperm.xlu0 %1187, %v289
      %v1189 = vpop.permute.xlu0 %1188
      %1191 = vset.pattern.permute.xlu0 2
      %1192 = vperm.xlu0 %1191, %v290
      %v1193 = vpop.permute.xlu0 %1192
      %v1195 = vmul.f32 %v1137, %v1189
      %v1196 = vmul.f32 %v1138, %v1189
      %v1197 = vmul.f32 %v1139, %v1189
      %v1198 = vmul.f32 %v1140, %v1189
      %v1199 = vmul.f32 %v1141, %v1193
      %v1200 = vmul.f32 %v1142, %v1193
      %v1201 = vmul.f32 %v1143, %v1193
      %v1202 = vmul.f32 %v1144, %v1193
      %v1203 = vadd.f32 %v1179, %v1195
      %v1204 = vadd.f32 %v1180, %v1196
      %v1205 = vadd.f32 %v1181, %v1197
      %v1206 = vadd.f32 %v1182, %v1198
      %v1207 = vadd.f32 %v1183, %v1199
      %v1208 = vadd.f32 %v1184, %v1200
      %v1209 = vadd.f32 %v1185, %v1201
      %v1210 = vadd.f32 %v1186, %v1202
      %1211 = vrot.lane.b32.xlu0 %v943, 127
      %v1212 = vpop.permute.xlu0 %1211
      %1213 = vrot.lane.b32.xlu0 %v946, 127
      %v1214 = vpop.permute.xlu0 %1213
      %1215 = vrot.lane.b32.xlu0 %v966, 127
      %v1216 = vpop.permute.xlu0 %1215
      %1217 = vrot.lane.b32.xlu0 %v969, 127
      %v1218 = vpop.permute.xlu0 %1217
      %1219 = vrot.lane.b32.xlu0 %v989, 127
      %v1220 = vpop.permute.xlu0 %1219
      %1221 = vrot.lane.b32.xlu0 %v992, 127
      %v1222 = vpop.permute.xlu0 %1221
      %1223 = vrot.lane.b32.xlu0 %v1012, 127
      %v1224 = vpop.permute.xlu0 %1223
      %1225 = vrot.lane.b32.xlu0 %v1015, 127
      %v1226 = vpop.permute.xlu0 %1225
      %v1227 = vsel %vm489, %v1220, %v1224
      %v1228 = vsel %vm489, %v1222, %v1226
      %v1229 = vsel %vm489, %v1216, %v1220
      %v1230 = vsel %vm489, %v1218, %v1222
      %v1231 = vsel %vm489, %v1212, %v1216
      %v1232 = vsel %vm489, %v1214, %v1218
      %v1233 = vsel %vm489, %v1224, %v1212
      %v1234 = vsel %vm489, %v1226, %v1214
      %1235 = vrot.lane.b32.xlu0 %v943, 1
      %v1236 = vpop.permute.xlu0 %1235
      %1237 = vrot.lane.b32.xlu0 %v946, 1
      %v1238 = vpop.permute.xlu0 %1237
      %1239 = vrot.lane.b32.xlu0 %v966, 1
      %v1240 = vpop.permute.xlu0 %1239
      %1241 = vrot.lane.b32.xlu0 %v969, 1
      %v1242 = vpop.permute.xlu0 %1241
      %1243 = vrot.lane.b32.xlu0 %v989, 1
      %v1244 = vpop.permute.xlu0 %1243
      %1245 = vrot.lane.b32.xlu0 %v992, 1
      %v1246 = vpop.permute.xlu0 %1245
      %1247 = vrot.lane.b32.xlu0 %v1012, 1
      %v1248 = vpop.permute.xlu0 %1247
      %1249 = vrot.lane.b32.xlu0 %v1015, 1
      %v1250 = vpop.permute.xlu0 %1249
      %v1251 = vsel %vm514, %v1244, %v1248
      %v1252 = vsel %vm514, %v1246, %v1250
      %v1253 = vsel %vm514, %v1240, %v1244
      %v1254 = vsel %vm514, %v1242, %v1246
      %v1255 = vsel %vm514, %v1236, %v1240
      %v1256 = vsel %vm514, %v1238, %v1242
      %v1257 = vsel %vm514, %v1248, %v1236
      %v1258 = vsel %vm514, %v1250, %v1238
      %v1259 = vsel %vm527, %v1231, %v1257
      %v1260 = vsel %vm528, %v1229, %v1255
      %v1261 = vsel %vm529, %v1227, %v1253
      %v1262 = vsel %vm530, %v1233, %v1251
      %v1263 = vsel %vm527, %v1232, %v1258
      %v1264 = vsel %vm528, %v1230, %v1256
      %v1265 = vsel %vm529, %v1228, %v1254
      %v1266 = vsel %vm530, %v1234, %v1252
      %v1267 = vsel %vm543, %v1257, %v1231
      %v1268 = vsel %vm544, %v1255, %v1229
      %v1269 = vsel %vm545, %v1253, %v1227
      %v1270 = vsel %vm546, %v1251, %v1233
      %v1271 = vsel %vm543, %v1258, %v1232
      %v1272 = vsel %vm544, %v1256, %v1230
      %v1273 = vsel %vm545, %v1254, %v1228
      %v1274 = vsel %vm546, %v1252, %v1234
      %1275 = vset.pattern.permute.xlu0 3
      %1276 = vperm.xlu0 %1275, %v289
      %v1277 = vpop.permute.xlu0 %1276
      %1279 = vset.pattern.permute.xlu0 3
      %1280 = vperm.xlu0 %1279, %v290
      %v1281 = vpop.permute.xlu0 %1280
      %v1283 = vmul.f32 %v1259, %v1277
      %v1284 = vmul.f32 %v1260, %v1277
      %v1285 = vmul.f32 %v1261, %v1277
      %v1286 = vmul.f32 %v1262, %v1277
      %v1287 = vmul.f32 %v1263, %v1281
      %v1288 = vmul.f32 %v1264, %v1281
      %v1289 = vmul.f32 %v1265, %v1281
      %v1290 = vmul.f32 %v1266, %v1281
      %v1291 = vadd.f32 %v1203, %v1283
      %v1292 = vadd.f32 %v1204, %v1284
      %v1293 = vadd.f32 %v1205, %v1285
      %v1294 = vadd.f32 %v1206, %v1286
      %v1295 = vadd.f32 %v1207, %v1287
      %v1296 = vadd.f32 %v1208, %v1288
      %v1297 = vadd.f32 %v1209, %v1289
      %v1298 = vadd.f32 %v1210, %v1290
      %1299 = vset.pattern.permute.xlu0 4
      %1300 = vperm.xlu0 %1299, %v289
      %v1301 = vpop.permute.xlu0 %1300
      %1303 = vset.pattern.permute.xlu0 4
      %1304 = vperm.xlu0 %1303, %v290
      %v1305 = vpop.permute.xlu0 %1304
      %v1307 = vmul.f32 %v943, %v1301
      %v1308 = vmul.f32 %v966, %v1301
      %v1309 = vmul.f32 %v989, %v1301
      %v1310 = vmul.f32 %v1012, %v1301
      %v1311 = vmul.f32 %v946, %v1305
      %v1312 = vmul.f32 %v969, %v1305
      %v1313 = vmul.f32 %v992, %v1305
      %v1314 = vmul.f32 %v1015, %v1305
      %v1315 = vadd.f32 %v1291, %v1307
      %v1316 = vadd.f32 %v1292, %v1308
      %v1317 = vadd.f32 %v1293, %v1309
      %v1318 = vadd.f32 %v1294, %v1310
      %v1319 = vadd.f32 %v1295, %v1311
      %v1320 = vadd.f32 %v1296, %v1312
      %v1321 = vadd.f32 %v1297, %v1313
      %v1322 = vadd.f32 %v1298, %v1314
      %1323 = vset.pattern.permute.xlu0 5
      %1324 = vperm.xlu0 %1323, %v289
      %v1325 = vpop.permute.xlu0 %1324
      %1327 = vset.pattern.permute.xlu0 5
      %1328 = vperm.xlu0 %1327, %v290
      %v1329 = vpop.permute.xlu0 %1328
      %v1331 = vmul.f32 %v1267, %v1325
      %v1332 = vmul.f32 %v1268, %v1325
      %v1333 = vmul.f32 %v1269, %v1325
      %v1334 = vmul.f32 %v1270, %v1325
      %v1335 = vmul.f32 %v1271, %v1329
      %v1336 = vmul.f32 %v1272, %v1329
      %v1337 = vmul.f32 %v1273, %v1329
      %v1338 = vmul.f32 %v1274, %v1329
      %v1339 = vadd.f32 %v1315, %v1331
      %v1340 = vadd.f32 %v1316, %v1332
      %v1341 = vadd.f32 %v1317, %v1333
      %v1342 = vadd.f32 %v1318, %v1334
      %v1343 = vadd.f32 %v1319, %v1335
      %v1344 = vadd.f32 %v1320, %v1336
      %v1345 = vadd.f32 %v1321, %v1337
      %v1346 = vadd.f32 %v1322, %v1338
      %1347 = vrot.lane.b32.xlu0 %v1073, 127
      %v1348 = vpop.permute.xlu0 %1347
      %1349 = vrot.lane.b32.xlu0 %v1077, 127
      %v1350 = vpop.permute.xlu0 %1349
      %1351 = vrot.lane.b32.xlu0 %v1074, 127
      %v1352 = vpop.permute.xlu0 %1351
      %1353 = vrot.lane.b32.xlu0 %v1078, 127
      %v1354 = vpop.permute.xlu0 %1353
      %1355 = vrot.lane.b32.xlu0 %v1075, 127
      %v1356 = vpop.permute.xlu0 %1355
      %1357 = vrot.lane.b32.xlu0 %v1079, 127
      %v1358 = vpop.permute.xlu0 %1357
      %1359 = vrot.lane.b32.xlu0 %v1076, 127
      %v1360 = vpop.permute.xlu0 %1359
      %1361 = vrot.lane.b32.xlu0 %v1080, 127
      %v1362 = vpop.permute.xlu0 %1361
      %v1363 = vsel %vm489, %v1356, %v1360
      %v1364 = vsel %vm489, %v1358, %v1362
      %v1365 = vsel %vm489, %v1352, %v1356
      %v1366 = vsel %vm489, %v1354, %v1358
      %v1367 = vsel %vm489, %v1348, %v1352
      %v1368 = vsel %vm489, %v1350, %v1354
      %v1369 = vsel %vm489, %v1360, %v1348
      %v1370 = vsel %vm489, %v1362, %v1350
      %1371 = vrot.lane.b32.xlu0 %v1073, 1
      %v1372 = vpop.permute.xlu0 %1371
      %1373 = vrot.lane.b32.xlu0 %v1077, 1
      %v1374 = vpop.permute.xlu0 %1373
      %1375 = vrot.lane.b32.xlu0 %v1074, 1
      %v1376 = vpop.permute.xlu0 %1375
      %1377 = vrot.lane.b32.xlu0 %v1078, 1
      %v1378 = vpop.permute.xlu0 %1377
      %1379 = vrot.lane.b32.xlu0 %v1075, 1
      %v1380 = vpop.permute.xlu0 %1379
      %1381 = vrot.lane.b32.xlu0 %v1079, 1
      %v1382 = vpop.permute.xlu0 %1381
      %1383 = vrot.lane.b32.xlu0 %v1076, 1
      %v1384 = vpop.permute.xlu0 %1383
      %1385 = vrot.lane.b32.xlu0 %v1080, 1
      %v1386 = vpop.permute.xlu0 %1385
      %v1387 = vsel %vm514, %v1380, %v1384
      %v1388 = vsel %vm514, %v1382, %v1386
      %v1389 = vsel %vm514, %v1376, %v1380
      %v1390 = vsel %vm514, %v1378, %v1382
      %v1391 = vsel %vm514, %v1372, %v1376
      %v1392 = vsel %vm514, %v1374, %v1378
      %v1393 = vsel %vm514, %v1384, %v1372
      %v1394 = vsel %vm514, %v1386, %v1374
      %v1395 = vsel %vm527, %v1367, %v1393
      %v1396 = vsel %vm528, %v1365, %v1391
      %v1397 = vsel %vm529, %v1363, %v1389
      %v1398 = vsel %vm530, %v1369, %v1387
      %v1399 = vsel %vm527, %v1368, %v1394
      %v1400 = vsel %vm528, %v1366, %v1392
      %v1401 = vsel %vm529, %v1364, %v1390
      %v1402 = vsel %vm530, %v1370, %v1388
      %v1403 = vsel %vm543, %v1393, %v1367
      %v1404 = vsel %vm544, %v1391, %v1365
      %v1405 = vsel %vm545, %v1389, %v1363
      %v1406 = vsel %vm546, %v1387, %v1369
      %v1407 = vsel %vm543, %v1394, %v1368
      %v1408 = vsel %vm544, %v1392, %v1366
      %v1409 = vsel %vm545, %v1390, %v1364
      %v1410 = vsel %vm546, %v1388, %v1370
      %1411 = vset.pattern.permute.xlu0 6
      %1412 = vperm.xlu0 %1411, %v289
      %v1413 = vpop.permute.xlu0 %1412
      %1415 = vset.pattern.permute.xlu0 6
      %1416 = vperm.xlu0 %1415, %v290
      %v1417 = vpop.permute.xlu0 %1416
      %v1419 = vmul.f32 %v1395, %v1413
      %v1420 = vmul.f32 %v1396, %v1413
      %v1421 = vmul.f32 %v1397, %v1413
      %v1422 = vmul.f32 %v1398, %v1413
      %v1423 = vmul.f32 %v1399, %v1417
      %v1424 = vmul.f32 %v1400, %v1417
      %v1425 = vmul.f32 %v1401, %v1417
      %v1426 = vmul.f32 %v1402, %v1417
      %v1427 = vadd.f32 %v1339, %v1419
      %v1428 = vadd.f32 %v1340, %v1420
      %v1429 = vadd.f32 %v1341, %v1421
      %v1430 = vadd.f32 %v1342, %v1422
      %v1431 = vadd.f32 %v1343, %v1423
      %v1432 = vadd.f32 %v1344, %v1424
      %v1433 = vadd.f32 %v1345, %v1425
      %v1434 = vadd.f32 %v1346, %v1426
      %1435 = vset.pattern.permute.xlu0 7
      %1436 = vperm.xlu0 %1435, %v289
      %v1437 = vpop.permute.xlu0 %1436
      %1439 = vset.pattern.permute.xlu0 7
      %1440 = vperm.xlu0 %1439, %v290
      %v1441 = vpop.permute.xlu0 %1440
      %v1443 = vmul.f32 %v1073, %v1437
      %v1444 = vmul.f32 %v1074, %v1437
      %v1445 = vmul.f32 %v1075, %v1437
      %v1446 = vmul.f32 %v1076, %v1437
      %v1447 = vmul.f32 %v1077, %v1441
      %v1448 = vmul.f32 %v1078, %v1441
      %v1449 = vmul.f32 %v1079, %v1441
      %v1450 = vmul.f32 %v1080, %v1441
      %v1451 = vadd.f32 %v1427, %v1443
      %v1452 = vadd.f32 %v1428, %v1444
      %v1453 = vadd.f32 %v1429, %v1445
      %v1454 = vadd.f32 %v1430, %v1446
      %v1455 = vadd.f32 %v1431, %v1447
      %v1456 = vadd.f32 %v1432, %v1448
      %v1457 = vadd.f32 %v1433, %v1449
      %v1458 = vadd.f32 %v1434, %v1450
      %1459 = vset.pattern.permute.xlu0 8
      %1460 = vperm.xlu0 %1459, %v289
      %v1461 = vpop.permute.xlu0 %1460
      %1463 = vset.pattern.permute.xlu0 8
      %1464 = vperm.xlu0 %1463, %v290
      %v1465 = vpop.permute.xlu0 %1464
      %v1467 = vmul.f32 %v1403, %v1461
      %v1468 = vmul.f32 %v1404, %v1461
      %v1469 = vmul.f32 %v1405, %v1461
      %v1470 = vmul.f32 %v1406, %v1461
      %v1471 = vmul.f32 %v1407, %v1465
      %v1472 = vmul.f32 %v1408, %v1465
      %v1473 = vmul.f32 %v1409, %v1465
      %v1474 = vmul.f32 %v1410, %v1465
      %v1475 = vadd.f32 %v1451, %v1467
      %v1476 = vadd.f32 %v1452, %v1468
      %v1477 = vadd.f32 %v1453, %v1469
      %v1478 = vadd.f32 %v1454, %v1470
      %v1479 = vadd.f32 %v1455, %v1471
      %v1480 = vadd.f32 %v1456, %v1472
      %v1481 = vadd.f32 %v1457, %v1473
      %v1482 = vadd.f32 %v1458, %v1474
      %1483 = vset.pattern.permute.xlu0 1
      %1484 = vperm.xlu0 %1483, %v291
      %v1485 = vpop.permute.xlu0 %1484
      %1487 = vset.pattern.permute.xlu0 1
      %1488 = vperm.xlu0 %1487, %v292
      %v1489 = vpop.permute.xlu0 %1488
      %v1491 = vadd.f32 %v1475, %v1485
      %v1492 = vadd.f32 %v1476, %v1485
      %v1493 = vadd.f32 %v1477, %v1485
      %v1494 = vadd.f32 %v1478, %v1485
      %v1495 = vadd.f32 %v1479, %v1489
      %v1496 = vadd.f32 %v1480, %v1489
      %v1497 = vadd.f32 %v1481, %v1489
      %v1498 = vadd.f32 %v1482, %v1489
      %v1499 = vadd.f32 %v198, %v1491
      %v1500 = vadd.f32 %v199, %v1492
      %v1501 = vadd.f32 %v200, %v1493
      %v1502 = vadd.f32 %v201, %v1494
      %v1503 = vadd.f32 %v202, %v1495
      %v1504 = vadd.f32 %v203, %v1496
      %v1505 = vadd.f32 %v204, %v1497
      %v1506 = vadd.f32 %v205, %v1498
      %1507 = vst [vmem:[%s197] sm:$0xff] %v1499
      %1508 = vst [vmem:[%s197 + $0x8] sm:$0xff] %v1500
      %1509 = vst [vmem:[%s197 + $0x10] sm:$0xff] %v1501
      %1510 = vst [vmem:[%s197 + $0x18] sm:$0xff] %v1502
      %1511 = vst [vmem:[%s197 + $0x20] sm:$0xff] %v1503
      %1512 = vst [vmem:[%s197 + $0x28] sm:$0xff] %v1504
      %1513 = vst [vmem:[%s197 + $0x30] sm:$0xff] %v1505
      %1514 = vst [vmem:[%s197 + $0x38] sm:$0xff] %v1506
      %p1515 = scmp.lt.s32.totalorder %s15, 1
      %s1516 = scalar_select %p1515, %s15, 1
      %s1517 = smul.addr %s1516, 8
      %s1518 = smul.addr %s1517, 8
      %s1519 = scalar_lea.vmem %s4, %s1518
      // Predicated region
      $region37: #{resblock_forward.1} parent=35 // pred_check
        %p1520 = pneg %p122
      $region38: #{resblock_forward.1} parent=35 // pred_check_branch
        %1522 = sbr.rel (%p1520) target = $region40
      $region39: #{resblock_forward.1} parent=35 // pred_region
        _
      $region40: #{resblock_forward.1} parent=35 // pred_fallthru
        _
    $region36: #{resblock_forward.1} parent=5 // pred_fallthru
      _
    %p1523 = scmp.le.s32.totalorder 2, %s10
    // Predicated region
    $region41: #{resblock_forward.1} parent=5 // pred_check
      %p1524 = pneg %p1523
    $region42: #{resblock_forward.1} parent=5 // pred_check_branch
      %1526 = sbr.rel (%p1524) target = $region44
    $region43: #{resblock_forward.1} parent=5 // pred_region
      %s1527 = ssub.s32 %s10, 2
      // Predicated region
      $region45: #{resblock_forward.1} parent=43 // pred_check
        %p1528 = pneg %p128
      $region46: #{resblock_forward.1} parent=43 // pred_check_branch
        %1530 = sbr.rel (%p1528) target = $region48
      $region47: #{resblock_forward.1} parent=43 // pred_region
        %p1531 = scmp.lt.s32.totalorder %s16, 1
        %s1532 = scalar_select %p1531, %s16, 1
        %s1533 = smul.addr %s1532, 8
        %s1534 = smul.addr %s1533, 8
        %s1535 = scalar_lea.vmem %s4, %s1534
      $region48: #{resblock_forward.1} parent=43 // pred_fallthru
        _
    $region44: #{resblock_forward.1} parent=5 // pred_fallthru
      _
  $region6: #{resblock_forward.1} parent=0 // loop_footer
    %s14 = sadd.s32 1, %s10
  $region7: #{resblock_forward.1} parent=0 // loop_footer_branch
    %9 = sbr.rel target = $region3
  $region8: #{resblock_forward.1} parent=0 // loop_exit
    _

</llo_original>
